<compile_context>
chip_gen: v7x
topology: tpu7x:2x2x1
jax: 0.10.0
libtpu: 0.0.40
codegen_flags: <defaults>
</compile_context>

<pallas_src>
import functools

import jax
import jax.numpy as jnp
import numpy as np
from jax.experimental import pallas as pl
from jax.experimental.pallas import tpu as pltpu


def lstm_seq_kernel(x_ref, h0_ref, c0_ref, wih_ref, whh_ref, b_ref,
                    out_ref, cn_ref, xproj_ref, *, seq_len, hidden_dim,
                    static_unroll_max=16, fori_unroll=8):
    T, H = seq_len, hidden_dim
    Bb = h0_ref.shape[0]          # batch block (padded, multiple of 8)
    D = x_ref.shape[-1]

    # ---- Prologue: whole-sequence input projection, one MXU matmul ----
    # (T, Bb, D) -> (T*Bb, D): collapses leading dims at a sublane multiple,
    # so it is a clean relayout, not a copy.
    x2d = x_ref[...].reshape(T * Bb, D)
    xp = jnp.dot(x2d, wih_ref[...], preferred_element_type=jnp.float32)
    xp = xp + b_ref[...]                               # (T*Bb, 4H) f32
    # Park in VMEM scratch so per-step reads are aligned leading-axis loads
    # and x_proj does not live in vregs across the whole unrolled loop.
    xproj_ref[...] = xp.reshape(T, Bb, 4 * H)

    h = h0_ref[...].astype(jnp.float32)                # (Bb, H)
    c = c0_ref[...].astype(jnp.float32)                # (Bb, H)
    whh = whh_ref[...]                                 # (H, 4H), loop-invariant

    def step(t, h, c):
        # Only h @ W_hh^T remains on the serial critical path.
        gates = xproj_ref[t] + jnp.dot(h.astype(whh.dtype), whh,
                                       preferred_element_type=jnp.float32)
        # g-gate pre-activations were pre-scaled by 2, so ONE sigmoid over the
        # full lane-dense (Bb, 4H) tile covers all gates:
        #   i, f, o = sigmoid(z);   g = tanh(z) = 2*sigmoid(2z) - 1.
        s = jax.nn.sigmoid(gates)
        i_g = s[:, 0 * H:1 * H]
        f_g = s[:, 1 * H:2 * H]
        g_g = 2.0 * s[:, 2 * H:3 * H] - 1.0
        o_g = s[:, 3 * H:4 * H]

        c = f_g * c + i_g * g_g
        h = o_g * jnp.tanh(c)
        out_ref[t] = h.astype(out_ref.dtype)
        return h, c

    if T <= static_unroll_max:
        # Small static T: full unroll gives the LLO scheduler max visibility.
        for t in range(T):
            h, c = step(t, h, c)
    else:
        # Larger T: bound live ranges / code size, keep moderate unroll.
        def body(t, carry):
            return step(t, *carry)
        h, c = jax.lax.fori_loop(0, T, body, (h, c), unroll=fori_unroll)

    cn_ref[...] = c.astype(cn_ref.dtype)


def prepare_params(params, matmul_dtype=jnp.float32):
    """One-time weight prep: transpose, bias fold, g-gate x2 scaling, dtype cast.

    matmul_dtype=jnp.bfloat16 is recommended on v6e/v7x (MXU operands only;
    gate/cell math stays f32 inside the kernel, which is v5e-safe).
    """
    H = params["w_hh"].shape[1]
    wih_t = jnp.asarray(params["w_ih"]).T.astype(jnp.float32)   # (D, 4H)
    whh_t = jnp.asarray(params["w_hh"]).T.astype(jnp.float32)   # (H, 4H)
    bias = (params["b_ih"] + params["b_hh"]).reshape(1, 4 * H).astype(jnp.float32)

    # Fold the x2 scaling of the g-gate pre-activations into the parameters so
    # the kernel needs no per-step multiply for the tanh-via-sigmoid trick.
    scale = jnp.ones((1, 4 * H), jnp.float32).at[:, 2 * H:3 * H].set(2.0)
    return {
        "wih_t": (wih_t * scale).astype(matmul_dtype),
        "whh_t": (whh_t * scale).astype(matmul_dtype),
        "bias": bias * scale,                                    # stays f32
        "hidden_dim": H,
    }


def encoder_forward(x, hidden, prepped, *, batch_block=None):
    """Pallas equivalent of Encoder.forward(x, hidden).

    x:       (T, B, input_dim) float32
    hidden:  (h0, c0), each (1, B, H) float32  (PyTorch LSTM convention)
    prepped: output of prepare_params()
    batch_block: optional batch-block size (multiple of 8). Setting it to
        padded_B // 2 on v7x splits the independent batch recurrences across
        the two TensorCores via the parallel grid axis.
    """
    h0, c0 = hidden
    T, B, D = x.shape
    H = prepped["hidden_dim"]
    mm_dtype = prepped["wih_t"].dtype

    # Pad batch to a multiple of 8 so every per-step tile is sublane-aligned.
    B_pad = max(8, ((B + 7) // 8) * 8)
    if batch_block is None:
        batch_block = B_pad
    assert batch_block % 8 == 0 and B_pad % batch_block == 0
    nb = B_pad // batch_block

    pad_b = B_pad - B
    x_p = jnp.pad(x, ((0, 0), (0, pad_b), (0, 0))).astype(mm_dtype)
    h0_p = jnp.pad(h0.reshape(B, H).astype(jnp.float32), ((0, pad_b), (0, 0)))
    c0_p = jnp.pad(c0.reshape(B, H).astype(jnp.float32), ((0, pad_b), (0, 0)))

    kernel = functools.partial(lstm_seq_kernel, seq_len=T, hidden_dim=H)

    out, cn = pl.pallas_call(
        kernel,
        out_shape=(
            jax.ShapeDtypeStruct((T, B_pad, H), jnp.float32),
            jax.ShapeDtypeStruct((B_pad, H), jnp.float32),
        ),
        grid=(nb,),
        in_specs=[
            pl.BlockSpec((T, batch_block, D), lambda i: (0, i, 0)),   # x
            pl.BlockSpec((batch_block, H), lambda i: (i, 0)),         # h0
            pl.BlockSpec((batch_block, H), lambda i: (i, 0)),         # c0
            pl.BlockSpec((D, 4 * H), lambda i: (0, 0)),               # W_ih^T
            pl.BlockSpec((H, 4 * H), lambda i: (0, 0)),               # W_hh^T
            pl.BlockSpec((1, 4 * H), lambda i: (0, 0)),               # bias
        ],
        out_specs=(
            pl.BlockSpec((T, batch_block, H), lambda i: (0, i, 0)),   # output
            pl.BlockSpec((batch_block, H), lambda i: (i, 0)),         # c_n
        ),
        scratch_shapes=[pltpu.VMEM((T, batch_block, 4 * H), jnp.float32)],
        compiler_params=pltpu.CompilerParams(
            dimension_semantics=("parallel",)),
    )(x_p, h0_p, c0_p, prepped["wih_t"], prepped["whh_t"], prepped["bias"])

    out = out[:, :B, :]
    h_n = out[T - 1:T]                 # final hidden state == last output row
    c_n = cn[:B].reshape(1, B, H)
    return out, (h_n, c_n)


def lstm_reference(x, hidden, params):
    """Pure-JAX reference matching PyTorch nn.LSTM semantics (gate order i,f,g,o)."""
    h = hidden[0][0]
    c = hidden[1][0]
    H = params["w_hh"].shape[1]
    wih_t = params["w_ih"].T
    whh_t = params["w_hh"].T
    b = params["b_ih"] + params["b_hh"]
    outs = []
    for t in range(x.shape[0]):
        g = x[t] @ wih_t + h @ whh_t + b
        i_g = jax.nn.sigmoid(g[:, 0 * H:1 * H])
        f_g = jax.nn.sigmoid(g[:, 1 * H:2 * H])
        g_g = jnp.tanh(g[:, 2 * H:3 * H])
        o_g = jax.nn.sigmoid(g[:, 3 * H:4 * H])
        c = f_g * c + i_g * g_g
        h = o_g * jnp.tanh(c)
        outs.append(h)
    return jnp.stack(outs, axis=0), (h[None], c[None])


if __name__ == "__main__":
    # Small shapes implied by the module: x is (seq_len, batch, input_dim).
    seq_len, batch, input_dim, hidden_dim = 8, 2, 4, 32

    key = jax.random.PRNGKey(0)
    kx, kw1, kw2, kb1, kb2 = jax.random.split(key, 5)

    # PyTorch LSTM default init: U(-1/sqrt(H), 1/sqrt(H)), deterministic here.
    bound = 1.0 / np.sqrt(hidden_dim)
    params = {
        "w_ih": jax.random.uniform(kw1, (4 * hidden_dim, input_dim),
                                   jnp.float32, -bound, bound),
        "w_hh": jax.random.uniform(kw2, (4 * hidden_dim, hidden_dim),
                                   jnp.float32, -bound, bound),
        "b_ih": jax.random.uniform(kb1, (4 * hidden_dim,),
                                   jnp.float32, -bound, bound),
        "b_hh": jax.random.uniform(kb2, (4 * hidden_dim,),
                                   jnp.float32, -bound, bound),
    }

    x = jax.random.normal(kx, (seq_len, batch, input_dim), jnp.float32)

    # Encoder.init_hidden: trainable-but-zero initial hidden / cell state.
    enc_init_hx = jnp.zeros((1, batch, hidden_dim), jnp.float32)
    enc_init_cx = jnp.zeros((1, batch, hidden_dim), jnp.float32)
    hidden = (enc_init_hx, enc_init_cx)

    ref_out, (ref_h, ref_c) = lstm_reference(x, hidden, params)

    # --- f32 MXU operands: exact PyTorch-parity path ---
    prepped_f32 = prepare_params(params, matmul_dtype=jnp.float32)
    out, (h_n, c_n) = encoder_forward(x, hidden, prepped_f32)
    jax.block_until_ready((out, h_n, c_n))
    assert np.allclose(np.asarray(out), np.asarray(ref_out), atol=1e-5)
    assert np.allclose(np.asarray(h_n), np.asarray(ref_h), atol=1e-5)
    assert np.allclose(np.asarray(c_n), np.asarray(ref_c), atol=1e-5)

    # --- bf16 MXU operands (v6e/v7x recommendation), gate math stays f32 ---
    prepped_bf16 = prepare_params(params, matmul_dtype=jnp.bfloat16)
    out_b, (h_b, c_b) = encoder_forward(x, hidden, prepped_bf16)
    jax.block_until_ready((out_b, h_b, c_b))
    assert np.allclose(np.asarray(out_b), np.asarray(ref_out), atol=2e-2)
    assert np.allclose(np.asarray(c_b), np.asarray(ref_c), atol=2e-2)

    print("KERNEL_OK")
</pallas_src>

<mosaic_0001>
module attributes {stable_mosaic.version = 11 : i64} {
  func.func @lstm_seq_kernel(%arg0: i32, %arg1: memref<8x8x4xf32, #tpu.memory_space<vmem>>, %arg2: memref<8x32xf32, #tpu.memory_space<vmem>>, %arg3: memref<8x32xf32, #tpu.memory_space<vmem>>, %arg4: memref<4x128xf32, #tpu.memory_space<vmem>>, %arg5: memref<32x128xf32, #tpu.memory_space<vmem>>, %arg6: memref<1x128xf32, #tpu.memory_space<vmem>>, %arg7: memref<8x8x32xf32, #tpu.memory_space<vmem>>, %arg8: memref<8x32xf32, #tpu.memory_space<vmem>>, %arg9: memref<8x8x128xf32, #tpu.memory_space<vmem>>) attributes {dimension_semantics = [#tpu.dimension_semantics<parallel>], iteration_bounds = array<i64: 1>, scalar_prefetch = 0 : i64, scratch_operands = 1 : i64, tpu.core_type = #tpu.core_type<tc>, window_params = [{transform_indices = @transform_0, window_bounds = array<i64: 8, 8, 4>}, {transform_indices = @transform_1, window_bounds = array<i64: 8, 32>}, {transform_indices = @transform_2, window_bounds = array<i64: 8, 32>}, {pipeline_mode = #tpu.pipeline_mode<synchronous>, transform_indices = @transform_3, window_bounds = array<i64: 4, 128>}, {pipeline_mode = #tpu.pipeline_mode<synchronous>, transform_indices = @transform_4, window_bounds = array<i64: 32, 128>}, {pipeline_mode = #tpu.pipeline_mode<synchronous>, transform_indices = @transform_5, window_bounds = array<i64: 1, 128>}, {transform_indices = @transform_6, window_bounds = array<i64: 8, 8, 32>}, {transform_indices = @transform_7, window_bounds = array<i64: 8, 32>}]} {
    %c0 = arith.constant 0 : index
    %c0_0 = arith.constant 0 : index
    %c0_1 = arith.constant 0 : index
    %0 = vector.load %arg1[%c0, %c0_0, %c0_1] : memref<8x8x4xf32, #tpu.memory_space<vmem>>, vector<8x8x4xf32>
    %1 = vector.shape_cast %0 : vector<8x8x4xf32> to vector<64x4xf32>
    %c0_2 = arith.constant 0 : index
    %c0_3 = arith.constant 0 : index
    %2 = vector.load %arg4[%c0_2, %c0_3] : memref<4x128xf32, #tpu.memory_space<vmem>>, vector<4x128xf32>
    %cst = arith.constant dense<0.000000e+00> : vector<64x128xf32>
    %3 = tpu.matmul %1, %2, %cst {dimension_numbers = #tpu.dot_dimension_numbers<[1], [0], [0], [1], [0, 0, 1, 1], [], []>} : vector<64x4xf32>, vector<4x128xf32>, vector<64x128xf32> -> vector<64x128xf32>
    %c0_4 = arith.constant 0 : index
    %c0_5 = arith.constant 0 : index
    %4 = vector.load %arg6[%c0_4, %c0_5] : memref<1x128xf32, #tpu.memory_space<vmem>>, vector<1x128xf32>
    %5 = vector.broadcast %4 : vector<1x128xf32> to vector<64x128xf32>
    %6 = arith.addf %3, %5 : vector<64x128xf32>
    %7 = vector.shape_cast %6 : vector<64x128xf32> to vector<8x8x128xf32>
    %c0_6 = arith.constant 0 : index
    %c0_7 = arith.constant 0 : index
    %c0_8 = arith.constant 0 : index
    %8 = vector.load %arg9[%c0_6, %c0_7, %c0_8] : memref<8x8x128xf32, #tpu.memory_space<vmem>>, vector<8x8x128xf32>
    tpu.vector_store %arg9[%c0_6, %c0_7, %c0_8], %7 {strides = array<i32>} : memref<8x8x128xf32, #tpu.memory_space<vmem>>, vector<8x8x128xf32>,
    %c0_9 = arith.constant 0 : index
    %c0_10 = arith.constant 0 : index
    %9 = vector.load %arg2[%c0_9, %c0_10] : memref<8x32xf32, #tpu.memory_space<vmem>>, vector<8x32xf32>
    %c0_11 = arith.constant 0 : index
    %c0_12 = arith.constant 0 : index
    %10 = vector.load %arg3[%c0_11, %c0_12] : memref<8x32xf32, #tpu.memory_space<vmem>>, vector<8x32xf32>
    %c0_13 = arith.constant 0 : index
    %c0_14 = arith.constant 0 : index
    %11 = vector.load %arg5[%c0_13, %c0_14] : memref<32x128xf32, #tpu.memory_space<vmem>>, vector<32x128xf32>
    %c0_15 = arith.constant 0 : index
    %c0_16 = arith.constant 0 : index
    %c0_17 = arith.constant 0 : index
    %12 = vector.load %arg9[%c0_15, %c0_16, %c0_17] : memref<8x8x128xf32, #tpu.memory_space<vmem>>, vector<1x8x128xf32>
    %13 = vector.shape_cast %12 : vector<1x8x128xf32> to vector<8x128xf32>
    %cst_18 = arith.constant dense<0.000000e+00> : vector<8x128xf32>
    %14 = tpu.matmul %9, %11, %cst_18 {dimension_numbers = #tpu.dot_dimension_numbers<[1], [0], [0], [1], [0, 0, 1, 1], [], []>} : vector<8x32xf32>, vector<32x128xf32>, vector<8x128xf32> -> vector<8x128xf32>
    %15 = arith.addf %13, %14 : vector<8x128xf32>
    %16 = arith.negf %15 : vector<8x128xf32>
    %17 = math.exp %16 : vector<8x128xf32>
    %cst_19 = arith.constant 1.000000e+00 : f32
    %18 = vector.broadcast %cst_19 : f32 to vector<8x128xf32>
    %19 = arith.addf %18, %17 : vector<8x128xf32>
    %20 = arith.divf %18, %19 : vector<8x128xf32>
    %21 = vector.extract_strided_slice %20 {offsets = [0, 0], sizes = [8, 32], strides = [1, 1]} : vector<8x128xf32> to vector<8x32xf32>
    %22 = vector.extract_strided_slice %20 {offsets = [0, 32], sizes = [8, 32], strides = [1, 1]} : vector<8x128xf32> to vector<8x32xf32>
    %23 = vector.extract_strided_slice %20 {offsets = [0, 64], sizes = [8, 32], strides = [1, 1]} : vector<8x128xf32> to vector<8x32xf32>
    %cst_20 = arith.constant 2.000000e+00 : f32
    %24 = vector.broadcast %cst_20 : f32 to vector<8x32xf32>
    %25 = arith.mulf %24, %23 : vector<8x32xf32>
    %cst_21 = arith.constant 1.000000e+00 : f32
    %26 = vector.broadcast %cst_21 : f32 to vector<8x32xf32>
    %27 = arith.subf %25, %26 : vector<8x32xf32>
    %28 = vector.extract_strided_slice %20 {offsets = [0, 96], sizes = [8, 32], strides = [1, 1]} : vector<8x128xf32> to vector<8x32xf32>
    %29 = arith.mulf %22, %10 : vector<8x32xf32>
    %30 = arith.mulf %21, %27 : vector<8x32xf32>
    %31 = arith.addf %29, %30 : vector<8x32xf32>
    %32 = math.tanh %31 : vector<8x32xf32>
    %33 = arith.mulf %28, %32 : vector<8x32xf32>
    %c0_22 = arith.constant 0 : index
    %c0_23 = arith.constant 0 : index
    %c0_24 = arith.constant 0 : index
    %34 = vector.load %arg7[%c0_22, %c0_23, %c0_24] : memref<8x8x32xf32, #tpu.memory_space<vmem>>, vector<1x8x32xf32>
    %35 = vector.shape_cast %34 : vector<1x8x32xf32> to vector<8x32xf32>
    %36 = vector.shape_cast %33 : vector<8x32xf32> to vector<1x8x32xf32>
    tpu.vector_store %arg7[%c0_22, %c0_23, %c0_24], %36 {strides = array<i32>} : memref<8x8x32xf32, #tpu.memory_space<vmem>>, vector<1x8x32xf32>,
    %c1 = arith.constant 1 : index
    %c0_25 = arith.constant 0 : index
    %c0_26 = arith.constant 0 : index
    %37 = vector.load %arg9[%c1, %c0_25, %c0_26] : memref<8x8x128xf32, #tpu.memory_space<vmem>>, vector<1x8x128xf32>
    %38 = vector.shape_cast %37 : vector<1x8x128xf32> to vector<8x128xf32>
    %cst_27 = arith.constant dense<0.000000e+00> : vector<8x128xf32>
    %39 = tpu.matmul %33, %11, %cst_27 {dimension_numbers = #tpu.dot_dimension_numbers<[1], [0], [0], [1], [0, 0, 1, 1], [], []>} : vector<8x32xf32>, vector<32x128xf32>, vector<8x128xf32> -> vector<8x128xf32>
    %40 = arith.addf %38, %39 : vector<8x128xf32>
    %41 = arith.negf %40 : vector<8x128xf32>
    %42 = math.exp %41 : vector<8x128xf32>
    %cst_28 = arith.constant 1.000000e+00 : f32
    %43 = vector.broadcast %cst_28 : f32 to vector<8x128xf32>
    %44 = arith.addf %43, %42 : vector<8x128xf32>
    %45 = arith.divf %43, %44 : vector<8x128xf32>
    %46 = vector.extract_strided_slice %45 {offsets = [0, 0], sizes = [8, 32], strides = [1, 1]} : vector<8x128xf32> to vector<8x32xf32>
    %47 = vector.extract_strided_slice %45 {offsets = [0, 32], sizes = [8, 32], strides = [1, 1]} : vector<8x128xf32> to vector<8x32xf32>
    %48 = vector.extract_strided_slice %45 {offsets = [0, 64], sizes = [8, 32], strides = [1, 1]} : vector<8x128xf32> to vector<8x32xf32>
    %cst_29 = arith.constant 2.000000e+00 : f32
    %49 = vector.broadcast %cst_29 : f32 to vector<8x32xf32>
    %50 = arith.mulf %49, %48 : vector<8x32xf32>
    %cst_30 = arith.constant 1.000000e+00 : f32
    %51 = vector.broadcast %cst_30 : f32 to vector<8x32xf32>
    %52 = arith.subf %50, %51 : vector<8x32xf32>
    %53 = vector.extract_strided_slice %45 {offsets = [0, 96], sizes = [8, 32], strides = [1, 1]} : vector<8x128xf32> to vector<8x32xf32>
    %54 = arith.mulf %47, %31 : vector<8x32xf32>
    %55 = arith.mulf %46, %52 : vector<8x32xf32>
    %56 = arith.addf %54, %55 : vector<8x32xf32>
    %57 = math.tanh %56 : vector<8x32xf32>
    %58 = arith.mulf %53, %57 : vector<8x32xf32>
    %c1_31 = arith.constant 1 : index
    %c0_32 = arith.constant 0 : index
    %c0_33 = arith.constant 0 : index
    %59 = vector.load %arg7[%c1_31, %c0_32, %c0_33] : memref<8x8x32xf32, #tpu.memory_space<vmem>>, vector<1x8x32xf32>
    %60 = vector.shape_cast %59 : vector<1x8x32xf32> to vector<8x32xf32>
    %61 = vector.shape_cast %58 : vector<8x32xf32> to vector<1x8x32xf32>
    tpu.vector_store %arg7[%c1_31, %c0_32, %c0_33], %61 {strides = array<i32>} : memref<8x8x32xf32, #tpu.memory_space<vmem>>, vector<1x8x32xf32>,
    %c2 = arith.constant 2 : index
    %c0_34 = arith.constant 0 : index
    %c0_35 = arith.constant 0 : index
    %62 = vector.load %arg9[%c2, %c0_34, %c0_35] : memref<8x8x128xf32, #tpu.memory_space<vmem>>, vector<1x8x128xf32>
    %63 = vector.shape_cast %62 : vector<1x8x128xf32> to vector<8x128xf32>
    %cst_36 = arith.constant dense<0.000000e+00> : vector<8x128xf32>
    %64 = tpu.matmul %58, %11, %cst_36 {dimension_numbers = #tpu.dot_dimension_numbers<[1], [0], [0], [1], [0, 0, 1, 1], [], []>} : vector<8x32xf32>, vector<32x128xf32>, vector<8x128xf32> -> vector<8x128xf32>
    %65 = arith.addf %63, %64 : vector<8x128xf32>
    %66 = arith.negf %65 : vector<8x128xf32>
    %67 = math.exp %66 : vector<8x128xf32>
    %cst_37 = arith.constant 1.000000e+00 : f32
    %68 = vector.broadcast %cst_37 : f32 to vector<8x128xf32>
    %69 = arith.addf %68, %67 : vector<8x128xf32>
    %70 = arith.divf %68, %69 : vector<8x128xf32>
    %71 = vector.extract_strided_slice %70 {offsets = [0, 0], sizes = [8, 32], strides = [1, 1]} : vector<8x128xf32> to vector<8x32xf32>
    %72 = vector.extract_strided_slice %70 {offsets = [0, 32], sizes = [8, 32], strides = [1, 1]} : vector<8x128xf32> to vector<8x32xf32>
    %73 = vector.extract_strided_slice %70 {offsets = [0, 64], sizes = [8, 32], strides = [1, 1]} : vector<8x128xf32> to vector<8x32xf32>
    %cst_38 = arith.constant 2.000000e+00 : f32
    %74 = vector.broadcast %cst_38 : f32 to vector<8x32xf32>
    %75 = arith.mulf %74, %73 : vector<8x32xf32>
    %cst_39 = arith.constant 1.000000e+00 : f32
    %76 = vector.broadcast %cst_39 : f32 to vector<8x32xf32>
    %77 = arith.subf %75, %76 : vector<8x32xf32>
    %78 = vector.extract_strided_slice %70 {offsets = [0, 96], sizes = [8, 32], strides = [1, 1]} : vector<8x128xf32> to vector<8x32xf32>
    %79 = arith.mulf %72, %56 : vector<8x32xf32>
    %80 = arith.mulf %71, %77 : vector<8x32xf32>
    %81 = arith.addf %79, %80 : vector<8x32xf32>
    %82 = math.tanh %81 : vector<8x32xf32>
    %83 = arith.mulf %78, %82 : vector<8x32xf32>
    %c2_40 = arith.constant 2 : index
    %c0_41 = arith.constant 0 : index
    %c0_42 = arith.constant 0 : index
    %84 = vector.load %arg7[%c2_40, %c0_41, %c0_42] : memref<8x8x32xf32, #tpu.memory_space<vmem>>, vector<1x8x32xf32>
    %85 = vector.shape_cast %84 : vector<1x8x32xf32> to vector<8x32xf32>
    %86 = vector.shape_cast %83 : vector<8x32xf32> to vector<1x8x32xf32>
    tpu.vector_store %arg7[%c2_40, %c0_41, %c0_42], %86 {strides = array<i32>} : memref<8x8x32xf32, #tpu.memory_space<vmem>>, vector<1x8x32xf32>,
    %c3 = arith.constant 3 : index
    %c0_43 = arith.constant 0 : index
    %c0_44 = arith.constant 0 : index
    %87 = vector.load %arg9[%c3, %c0_43, %c0_44] : memref<8x8x128xf32, #tpu.memory_space<vmem>>, vector<1x8x128xf32>
    %88 = vector.shape_cast %87 : vector<1x8x128xf32> to vector<8x128xf32>
    %cst_45 = arith.constant dense<0.000000e+00> : vector<8x128xf32>
    %89 = tpu.matmul %83, %11, %cst_45 {dimension_numbers = #tpu.dot_dimension_numbers<[1], [0], [0], [1], [0, 0, 1, 1], [], []>} : vector<8x32xf32>, vector<32x128xf32>, vector<8x128xf32> -> vector<8x128xf32>
    %90 = arith.addf %88, %89 : vector<8x128xf32>
    %91 = arith.negf %90 : vector<8x128xf32>
    %92 = math.exp %91 : vector<8x128xf32>
    %cst_46 = arith.constant 1.000000e+00 : f32
    %93 = vector.broadcast %cst_46 : f32 to vector<8x128xf32>
    %94 = arith.addf %93, %92 : vector<8x128xf32>
    %95 = arith.divf %93, %94 : vector<8x128xf32>
    %96 = vector.extract_strided_slice %95 {offsets = [0, 0], sizes = [8, 32], strides = [1, 1]} : vector<8x128xf32> to vector<8x32xf32>
    %97 = vector.extract_strided_slice %95 {offsets = [0, 32], sizes = [8, 32], strides = [1, 1]} : vector<8x128xf32> to vector<8x32xf32>
    %98 = vector.extract_strided_slice %95 {offsets = [0, 64], sizes = [8, 32], strides = [1, 1]} : vector<8x128xf32> to vector<8x32xf32>
    %cst_47 = arith.constant 2.000000e+00 : f32
    %99 = vector.broadcast %cst_47 : f32 to vector<8x32xf32>
    %100 = arith.mulf %99, %98 : vector<8x32xf32>
    %cst_48 = arith.constant 1.000000e+00 : f32
    %101 = vector.broadcast %cst_48 : f32 to vector<8x32xf32>
    %102 = arith.subf %100, %101 : vector<8x32xf32>
    %103 = vector.extract_strided_slice %95 {offsets = [0, 96], sizes = [8, 32], strides = [1, 1]} : vector<8x128xf32> to vector<8x32xf32>
    %104 = arith.mulf %97, %81 : vector<8x32xf32>
    %105 = arith.mulf %96, %102 : vector<8x32xf32>
    %106 = arith.addf %104, %105 : vector<8x32xf32>
    %107 = math.tanh %106 : vector<8x32xf32>
    %108 = arith.mulf %103, %107 : vector<8x32xf32>
    %c3_49 = arith.constant 3 : index
    %c0_50 = arith.constant 0 : index
    %c0_51 = arith.constant 0 : index
    %109 = vector.load %arg7[%c3_49, %c0_50, %c0_51] : memref<8x8x32xf32, #tpu.memory_space<vmem>>, vector<1x8x32xf32>
    %110 = vector.shape_cast %109 : vector<1x8x32xf32> to vector<8x32xf32>
    %111 = vector.shape_cast %108 : vector<8x32xf32> to vector<1x8x32xf32>
    tpu.vector_store %arg7[%c3_49, %c0_50, %c0_51], %111 {strides = array<i32>} : memref<8x8x32xf32, #tpu.memory_space<vmem>>, vector<1x8x32xf32>,
    %c4 = arith.constant 4 : index
    %c0_52 = arith.constant 0 : index
    %c0_53 = arith.constant 0 : index
    %112 = vector.load %arg9[%c4, %c0_52, %c0_53] : memref<8x8x128xf32, #tpu.memory_space<vmem>>, vector<1x8x128xf32>
    %113 = vector.shape_cast %112 : vector<1x8x128xf32> to vector<8x128xf32>
    %cst_54 = arith.constant dense<0.000000e+00> : vector<8x128xf32>
    %114 = tpu.matmul %108, %11, %cst_54 {dimension_numbers = #tpu.dot_dimension_numbers<[1], [0], [0], [1], [0, 0, 1, 1], [], []>} : vector<8x32xf32>, vector<32x128xf32>, vector<8x128xf32> -> vector<8x128xf32>
    %115 = arith.addf %113, %114 : vector<8x128xf32>
    %116 = arith.negf %115 : vector<8x128xf32>
    %117 = math.exp %116 : vector<8x128xf32>
    %cst_55 = arith.constant 1.000000e+00 : f32
    %118 = vector.broadcast %cst_55 : f32 to vector<8x128xf32>
    %119 = arith.addf %118, %117 : vector<8x128xf32>
    %120 = arith.divf %118, %119 : vector<8x128xf32>
    %121 = vector.extract_strided_slice %120 {offsets = [0, 0], sizes = [8, 32], strides = [1, 1]} : vector<8x128xf32> to vector<8x32xf32>
    %122 = vector.extract_strided_slice %120 {offsets = [0, 32], sizes = [8, 32], strides = [1, 1]} : vector<8x128xf32> to vector<8x32xf32>
    %123 = vector.extract_strided_slice %120 {offsets = [0, 64], sizes = [8, 32], strides = [1, 1]} : vector<8x128xf32> to vector<8x32xf32>
    %cst_56 = arith.constant 2.000000e+00 : f32
    %124 = vector.broadcast %cst_56 : f32 to vector<8x32xf32>
    %125 = arith.mulf %124, %123 : vector<8x32xf32>
    %cst_57 = arith.constant 1.000000e+00 : f32
    %126 = vector.broadcast %cst_57 : f32 to vector<8x32xf32>
    %127 = arith.subf %125, %126 : vector<8x32xf32>
    %128 = vector.extract_strided_slice %120 {offsets = [0, 96], sizes = [8, 32], strides = [1, 1]} : vector<8x128xf32> to vector<8x32xf32>
    %129 = arith.mulf %122, %106 : vector<8x32xf32>
    %130 = arith.mulf %121, %127 : vector<8x32xf32>
    %131 = arith.addf %129, %130 : vector<8x32xf32>
    %132 = math.tanh %131 : vector<8x32xf32>
    %133 = arith.mulf %128, %132 : vector<8x32xf32>
    %c4_58 = arith.constant 4 : index
    %c0_59 = arith.constant 0 : index
    %c0_60 = arith.constant 0 : index
    %134 = vector.load %arg7[%c4_58, %c0_59, %c0_60] : memref<8x8x32xf32, #tpu.memory_space<vmem>>, vector<1x8x32xf32>
    %135 = vector.shape_cast %134 : vector<1x8x32xf32> to vector<8x32xf32>
    %136 = vector.shape_cast %133 : vector<8x32xf32> to vector<1x8x32xf32>
    tpu.vector_store %arg7[%c4_58, %c0_59, %c0_60], %136 {strides = array<i32>} : memref<8x8x32xf32, #tpu.memory_space<vmem>>, vector<1x8x32xf32>,
    %c5 = arith.constant 5 : index
    %c0_61 = arith.constant 0 : index
    %c0_62 = arith.constant 0 : index
    %137 = vector.load %arg9[%c5, %c0_61, %c0_62] : memref<8x8x128xf32, #tpu.memory_space<vmem>>, vector<1x8x128xf32>
    %138 = vector.shape_cast %137 : vector<1x8x128xf32> to vector<8x128xf32>
    %cst_63 = arith.constant dense<0.000000e+00> : vector<8x128xf32>
    %139 = tpu.matmul %133, %11, %cst_63 {dimension_numbers = #tpu.dot_dimension_numbers<[1], [0], [0], [1], [0, 0, 1, 1], [], []>} : vector<8x32xf32>, vector<32x128xf32>, vector<8x128xf32> -> vector<8x128xf32>
    %140 = arith.addf %138, %139 : vector<8x128xf32>
    %141 = arith.negf %140 : vector<8x128xf32>
    %142 = math.exp %141 : vector<8x128xf32>
    %cst_64 = arith.constant 1.000000e+00 : f32
    %143 = vector.broadcast %cst_64 : f32 to vector<8x128xf32>
    %144 = arith.addf %143, %142 : vector<8x128xf32>
    %145 = arith.divf %143, %144 : vector<8x128xf32>
    %146 = vector.extract_strided_slice %145 {offsets = [0, 0], sizes = [8, 32], strides = [1, 1]} : vector<8x128xf32> to vector<8x32xf32>
    %147 = vector.extract_strided_slice %145 {offsets = [0, 32], sizes = [8, 32], strides = [1, 1]} : vector<8x128xf32> to vector<8x32xf32>
    %148 = vector.extract_strided_slice %145 {offsets = [0, 64], sizes = [8, 32], strides = [1, 1]} : vector<8x128xf32> to vector<8x32xf32>
    %cst_65 = arith.constant 2.000000e+00 : f32
    %149 = vector.broadcast %cst_65 : f32 to vector<8x32xf32>
    %150 = arith.mulf %149, %148 : vector<8x32xf32>
    %cst_66 = arith.constant 1.000000e+00 : f32
    %151 = vector.broadcast %cst_66 : f32 to vector<8x32xf32>
    %152 = arith.subf %150, %151 : vector<8x32xf32>
    %153 = vector.extract_strided_slice %145 {offsets = [0, 96], sizes = [8, 32], strides = [1, 1]} : vector<8x128xf32> to vector<8x32xf32>
    %154 = arith.mulf %147, %131 : vector<8x32xf32>
    %155 = arith.mulf %146, %152 : vector<8x32xf32>
    %156 = arith.addf %154, %155 : vector<8x32xf32>
    %157 = math.tanh %156 : vector<8x32xf32>
    %158 = arith.mulf %153, %157 : vector<8x32xf32>
    %c5_67 = arith.constant 5 : index
    %c0_68 = arith.constant 0 : index
    %c0_69 = arith.constant 0 : index
    %159 = vector.load %arg7[%c5_67, %c0_68, %c0_69] : memref<8x8x32xf32, #tpu.memory_space<vmem>>, vector<1x8x32xf32>
    %160 = vector.shape_cast %159 : vector<1x8x32xf32> to vector<8x32xf32>
    %161 = vector.shape_cast %158 : vector<8x32xf32> to vector<1x8x32xf32>
    tpu.vector_store %arg7[%c5_67, %c0_68, %c0_69], %161 {strides = array<i32>} : memref<8x8x32xf32, #tpu.memory_space<vmem>>, vector<1x8x32xf32>,
    %c6 = arith.constant 6 : index
    %c0_70 = arith.constant 0 : index
    %c0_71 = arith.constant 0 : index
    %162 = vector.load %arg9[%c6, %c0_70, %c0_71] : memref<8x8x128xf32, #tpu.memory_space<vmem>>, vector<1x8x128xf32>
    %163 = vector.shape_cast %162 : vector<1x8x128xf32> to vector<8x128xf32>
    %cst_72 = arith.constant dense<0.000000e+00> : vector<8x128xf32>
    %164 = tpu.matmul %158, %11, %cst_72 {dimension_numbers = #tpu.dot_dimension_numbers<[1], [0], [0], [1], [0, 0, 1, 1], [], []>} : vector<8x32xf32>, vector<32x128xf32>, vector<8x128xf32> -> vector<8x128xf32>
    %165 = arith.addf %163, %164 : vector<8x128xf32>
    %166 = arith.negf %165 : vector<8x128xf32>
    %167 = math.exp %166 : vector<8x128xf32>
    %cst_73 = arith.constant 1.000000e+00 : f32
    %168 = vector.broadcast %cst_73 : f32 to vector<8x128xf32>
    %169 = arith.addf %168, %167 : vector<8x128xf32>
    %170 = arith.divf %168, %169 : vector<8x128xf32>
    %171 = vector.extract_strided_slice %170 {offsets = [0, 0], sizes = [8, 32], strides = [1, 1]} : vector<8x128xf32> to vector<8x32xf32>
    %172 = vector.extract_strided_slice %170 {offsets = [0, 32], sizes = [8, 32], strides = [1, 1]} : vector<8x128xf32> to vector<8x32xf32>
    %173 = vector.extract_strided_slice %170 {offsets = [0, 64], sizes = [8, 32], strides = [1, 1]} : vector<8x128xf32> to vector<8x32xf32>
    %cst_74 = arith.constant 2.000000e+00 : f32
    %174 = vector.broadcast %cst_74 : f32 to vector<8x32xf32>
    %175 = arith.mulf %174, %173 : vector<8x32xf32>
    %cst_75 = arith.constant 1.000000e+00 : f32
    %176 = vector.broadcast %cst_75 : f32 to vector<8x32xf32>
    %177 = arith.subf %175, %176 : vector<8x32xf32>
    %178 = vector.extract_strided_slice %170 {offsets = [0, 96], sizes = [8, 32], strides = [1, 1]} : vector<8x128xf32> to vector<8x32xf32>
    %179 = arith.mulf %172, %156 : vector<8x32xf32>
    %180 = arith.mulf %171, %177 : vector<8x32xf32>
    %181 = arith.addf %179, %180 : vector<8x32xf32>
    %182 = math.tanh %181 : vector<8x32xf32>
    %183 = arith.mulf %178, %182 : vector<8x32xf32>
    %c6_76 = arith.constant 6 : index
    %c0_77 = arith.constant 0 : index
    %c0_78 = arith.constant 0 : index
    %184 = vector.load %arg7[%c6_76, %c0_77, %c0_78] : memref<8x8x32xf32, #tpu.memory_space<vmem>>, vector<1x8x32xf32>
    %185 = vector.shape_cast %184 : vector<1x8x32xf32> to vector<8x32xf32>
    %186 = vector.shape_cast %183 : vector<8x32xf32> to vector<1x8x32xf32>
    tpu.vector_store %arg7[%c6_76, %c0_77, %c0_78], %186 {strides = array<i32>} : memref<8x8x32xf32, #tpu.memory_space<vmem>>, vector<1x8x32xf32>,
    %c7 = arith.constant 7 : index
    %c0_79 = arith.constant 0 : index
    %c0_80 = arith.constant 0 : index
    %187 = vector.load %arg9[%c7, %c0_79, %c0_80] : memref<8x8x128xf32, #tpu.memory_space<vmem>>, vector<1x8x128xf32>
    %188 = vector.shape_cast %187 : vector<1x8x128xf32> to vector<8x128xf32>
    %cst_81 = arith.constant dense<0.000000e+00> : vector<8x128xf32>
    %189 = tpu.matmul %183, %11, %cst_81 {dimension_numbers = #tpu.dot_dimension_numbers<[1], [0], [0], [1], [0, 0, 1, 1], [], []>} : vector<8x32xf32>, vector<32x128xf32>, vector<8x128xf32> -> vector<8x128xf32>
    %190 = arith.addf %188, %189 : vector<8x128xf32>
    %191 = arith.negf %190 : vector<8x128xf32>
    %192 = math.exp %191 : vector<8x128xf32>
    %cst_82 = arith.constant 1.000000e+00 : f32
    %193 = vector.broadcast %cst_82 : f32 to vector<8x128xf32>
    %194 = arith.addf %193, %192 : vector<8x128xf32>
    %195 = arith.divf %193, %194 : vector<8x128xf32>
    %196 = vector.extract_strided_slice %195 {offsets = [0, 0], sizes = [8, 32], strides = [1, 1]} : vector<8x128xf32> to vector<8x32xf32>
    %197 = vector.extract_strided_slice %195 {offsets = [0, 32], sizes = [8, 32], strides = [1, 1]} : vector<8x128xf32> to vector<8x32xf32>
    %198 = vector.extract_strided_slice %195 {offsets = [0, 64], sizes = [8, 32], strides = [1, 1]} : vector<8x128xf32> to vector<8x32xf32>
    %cst_83 = arith.constant 2.000000e+00 : f32
    %199 = vector.broadcast %cst_83 : f32 to vector<8x32xf32>
    %200 = arith.mulf %199, %198 : vector<8x32xf32>
    %cst_84 = arith.constant 1.000000e+00 : f32
    %201 = vector.broadcast %cst_84 : f32 to vector<8x32xf32>
    %202 = arith.subf %200, %201 : vector<8x32xf32>
    %203 = vector.extract_strided_slice %195 {offsets = [0, 96], sizes = [8, 32], strides = [1, 1]} : vector<8x128xf32> to vector<8x32xf32>
    %204 = arith.mulf %197, %181 : vector<8x32xf32>
    %205 = arith.mulf %196, %202 : vector<8x32xf32>
    %206 = arith.addf %204, %205 : vector<8x32xf32>
    %207 = math.tanh %206 : vector<8x32xf32>
    %208 = arith.mulf %203, %207 : vector<8x32xf32>
    %c7_85 = arith.constant 7 : index
    %c0_86 = arith.constant 0 : index
    %c0_87 = arith.constant 0 : index
    %209 = vector.load %arg7[%c7_85, %c0_86, %c0_87] : memref<8x8x32xf32, #tpu.memory_space<vmem>>, vector<1x8x32xf32>
    %210 = vector.shape_cast %209 : vector<1x8x32xf32> to vector<8x32xf32>
    %211 = vector.shape_cast %208 : vector<8x32xf32> to vector<1x8x32xf32>
    tpu.vector_store %arg7[%c7_85, %c0_86, %c0_87], %211 {strides = array<i32>} : memref<8x8x32xf32, #tpu.memory_space<vmem>>, vector<1x8x32xf32>,
    %c0_88 = arith.constant 0 : index
    %c0_89 = arith.constant 0 : index
    %212 = vector.load %arg8[%c0_88, %c0_89] : memref<8x32xf32, #tpu.memory_space<vmem>>, vector<8x32xf32>
    tpu.vector_store %arg8[%c0_88, %c0_89], %206 {strides = array<i32>} : memref<8x32xf32, #tpu.memory_space<vmem>>, vector<8x32xf32>,
    return
  }
  func.func @transform_0(%arg0: i32) -> (i32, i32, i32) {
    %c0_i32 = arith.constant 0 : i32
    %c0_i32_0 = arith.constant 0 : i32
    %c0_i32_1 = arith.constant 0 : i32
    return %c0_i32, %arg0, %c0_i32_0 : i32, i32, i32
  }
  func.func @transform_1(%arg0: i32) -> (i32, i32) {
    %c0_i32 = arith.constant 0 : i32
    %c0_i32_0 = arith.constant 0 : i32
    return %arg0, %c0_i32 : i32, i32
  }
  func.func @transform_2(%arg0: i32) -> (i32, i32) {
    %c0_i32 = arith.constant 0 : i32
    %c0_i32_0 = arith.constant 0 : i32
    return %arg0, %c0_i32 : i32, i32
  }
  func.func @transform_3(%arg0: i32) -> (i32, i32) {
    %c0_i32 = arith.constant 0 : i32
    %c0_i32_0 = arith.constant 0 : i32
    %c0_i32_1 = arith.constant 0 : i32
    return %c0_i32, %c0_i32_0 : i32, i32
  }
  func.func @transform_4(%arg0: i32) -> (i32, i32) {
    %c0_i32 = arith.constant 0 : i32
    %c0_i32_0 = arith.constant 0 : i32
    %c0_i32_1 = arith.constant 0 : i32
    return %c0_i32, %c0_i32_0 : i32, i32
  }
  func.func @transform_5(%arg0: i32) -> (i32, i32) {
    %c0_i32 = arith.constant 0 : i32
    %c0_i32_0 = arith.constant 0 : i32
    %c0_i32_1 = arith.constant 0 : i32
    return %c0_i32, %c0_i32_0 : i32, i32
  }
  func.func @transform_6(%arg0: i32) -> (i32, i32, i32) {
    %c0_i32 = arith.constant 0 : i32
    %c0_i32_0 = arith.constant 0 : i32
    %c0_i32_1 = arith.constant 0 : i32
    return %c0_i32, %arg0, %c0_i32_0 : i32, i32, i32
  }
  func.func @transform_7(%arg0: i32) -> (i32, i32) {
    %c0_i32 = arith.constant 0 : i32
    %c0_i32_0 = arith.constant 0 : i32
    return %arg0, %c0_i32 : i32, i32
  }
}

</mosaic_0001>

<llo_original>
// kernel: tpu_custom_call.1
$region0: #{tpu_custom_call.1}
  #allocation0 [shape = 'u32[]', space=smem, size = 0x4, offset = 0x4, fixed_abs, tag = 'smem constant byte address 0x4 - core index']
  #allocation1 [shape = 'u32[144,128]{1,0:T(1,128)}', space=vmem, size = 0x12000, scoped, tag = 'internal scratch']
  #allocation2 [shape = 'f32[8,8,128]{2,1,0:T(8,128)}', space=vmem, size = 0x8000, scoped, tag = 'scratch operand']
  %s0 = inlined_call_operand.vmem [shape: f32[8,8,4], index: 0, kind: input, shape index: {}]
  %s1 = inlined_call_operand.vmem [shape: f32[8,32], index: 1, kind: input, shape index: {}]
  %s2 = inlined_call_operand.vmem [shape: f32[8,32], index: 2, kind: input, shape index: {}]
  %s3 = inlined_call_operand.vmem [shape: f32[4,128], index: 3, kind: input, shape index: {}]
  %s4 = inlined_call_operand.vmem [shape: f32[32,128], index: 4, kind: input, shape index: {}]
  %s5 = inlined_call_operand.vmem [shape: f32[1,128], index: 5, kind: input, shape index: {}]
  %s6 = inlined_call_operand.hbm [shape: f32[8,8,32], index: 6, kind: output, shape index: {0}]
  %s7 = inlined_call_operand.hbm [shape: f32[8,32], index: 7, kind: output, shape index: {1}]
  %8 = xla_tuple %s6, %s7
  %s9 = sld [smem:[#allocation0]]
  $region42: #{tpu_custom_call.1} parent=0
    _
  %s11 = ssub.s32 1, %s9
  %s12 = scalar_select 0, %s11, %s9
  $region1: #{tpu_custom_call.1} parent=0
    #allocation3 [shape = 'u8[32768]{0}', space=vmem, size = 0x8000, scoped, tag = 'output window, operand 0, single buffered']
    #allocation4 [shape = 's32[1]{0}', space=sflag, size = 0x4, scoped, tag = 'scoped memory for tpu_custom_call.1']
    #allocation5 [shape = 'u8[4096]{0}', space=vmem, size = 0x1000, scoped, tag = 'output window, operand 1, single buffered']
    #allocation6 [shape = 's32[1]{0}', space=sflag, size = 0x4, scoped, tag = 'scoped memory for tpu_custom_call.1']
    %13 = vsyncpa [#allocation4], 0
    %14 = vsyncpa [#allocation6], 0
    // Predicated region
    $region2: #{tpu_custom_call.1} parent=1 // pred_check
      _
    $region3: #{tpu_custom_call.1} parent=1 // pred_check_branch
      %16 = sbr.rel (0) target = $region5
    $region4: #{tpu_custom_call.1} parent=1 // pred_region
      _
    $region5: #{tpu_custom_call.1} parent=1 // pred_fallthru
      _
    // Predicated region
    $region6: #{tpu_custom_call.1} parent=1 // pred_check
      _
    $region7: #{tpu_custom_call.1} parent=1 // pred_check_branch
      %18 = sbr.rel (0) target = $region9
    $region8: #{tpu_custom_call.1} parent=1 // pred_region
      _
    $region9: #{tpu_custom_call.1} parent=1 // pred_fallthru
      _
    // Predicated region
    $region10: #{tpu_custom_call.1} parent=1 // pred_check
      _
    $region11: #{tpu_custom_call.1} parent=1 // pred_check_branch
      %20 = sbr.rel (0) target = $region13
    $region12: #{tpu_custom_call.1} parent=1 // pred_region
      _
    $region13: #{tpu_custom_call.1} parent=1 // pred_fallthru
      _
    // Predicated region
    $region14: #{tpu_custom_call.1} parent=1 // pred_check
      _
    $region15: #{tpu_custom_call.1} parent=1 // pred_check_branch
      %22 = sbr.rel (0) target = $region17
    $region16: #{tpu_custom_call.1} parent=1 // pred_region
      _
    $region17: #{tpu_custom_call.1} parent=1 // pred_fallthru
      _
    // Predicated region
    $region18: #{tpu_custom_call.1} parent=1 // pred_check
      _
    $region19: #{tpu_custom_call.1} parent=1 // pred_check_branch
      %24 = sbr.rel (0) target = $region21
    $region20: #{tpu_custom_call.1} parent=1 // pred_region
      _
    $region21: #{tpu_custom_call.1} parent=1 // pred_fallthru
      _
    // Predicated region
    $region22: #{tpu_custom_call.1} parent=1 // pred_check
      _
    $region23: #{tpu_custom_call.1} parent=1 // pred_check_branch
      %26 = sbr.rel (0) target = $region25
    $region24: #{tpu_custom_call.1} parent=1 // pred_region
      _
    $region25: #{tpu_custom_call.1} parent=1 // pred_fallthru
      _
    %v27 = vld [vmem:[%s0] sm:$0xff]
    %v28 = vld [vmem:[%s0 + $0x8] sm:$0xff]
    %v29 = vld [vmem:[%s0 + $0x10] sm:$0xff]
    %v30 = vld [vmem:[%s0 + $0x18] sm:$0xff]
    %v31 = vld [vmem:[%s0 + $0x20] sm:$0xff]
    %v32 = vld [vmem:[%s0 + $0x28] sm:$0xff]
    %v33 = vld [vmem:[%s0 + $0x30] sm:$0xff]
    %v34 = vld [vmem:[%s0 + $0x38] sm:$0xff]
    %v35 = vld [vmem:[%s3] sm:$0xf]
    %v36 = vld [vmem:[%s5] sm:$0x1]
    %v38 = vlaneseq
    %v39 = vshrl.u32 %v38, 7
    %v40 = vsub.s32 0, %v39
    %v41 = vrot.slane %v36, %v40
    %vm43 = vcmask 31744
    %v45 = vsel %vm43, %v27, 0
    %v48 = vsel %vm43, %v28, 0
    %v51 = vsel %vm43, %v29, 0
    %v54 = vsel %vm43, %v30, 0
    %v57 = vsel %vm43, %v31, 0
    %v60 = vsel %vm43, %v32, 0
    %v63 = vsel %vm43, %v33, 0
    %v66 = vsel %vm43, %v34, 0
    %vm68 = vcmask 1043456
    %v70 = vsel %vm68, %v35, 0
    %72 = vmatprep.subr.mxu0 0.0
    %73 = vmatpush1.msra.mxu0 %v70
    %74 = vmatprep.subr.mxu0 0.0
    %75 = vmatpush1.msra.mxu0 0.0
    %76 = vmatprep.subr.mxu0 0.0
    %77 = vmatpush1.msra.mxu0 0.0
    %78 = vmatprep.subr.mxu0 0.0
    %79 = vmatpush1.msra.mxu0 0.0
    %80 = vmatprep.subr.mxu0 0.0
    %81 = vmatpush1.msra.mxu0 0.0
    %82 = vmatprep.subr.mxu0 0.0
    %83 = vmatpush1.msra.mxu0 0.0
    %84 = vmatprep.subr.mxu0 0.0
    %85 = vmatpush1.msra.mxu0 0.0
    %86 = vmatprep.subr.mxu0 0.0
    %87 = vmatpush1.msra.mxu0 0.0
    %88 = vmatprep.subr.mxu0 0.0
    %89 = vmatpush1.msra.mxu0 0.0
    %90 = vmatprep.subr.mxu0 0.0
    %91 = vmatpush1.msra.mxu0 0.0
    %92 = vmatprep.subr.mxu0 0.0
    %93 = vmatpush1.msra.mxu0 0.0
    %94 = vmatprep.subr.mxu0 0.0
    %95 = vmatpush1.msra.mxu0 0.0
    %96 = vmatprep.subr.mxu0 0.0
    %97 = vmatpush1.msra.mxu0 0.0
    %98 = vmatprep.subr.mxu0 0.0
    %99 = vmatpush1.msra.mxu0 0.0
    %100 = vmatprep.subr.mxu0 0.0
    %101 = vmatpush1.msra.mxu0 0.0
    %102 = vmatprep.subr.mxu0 0.0
    %103 = vmatpush1.msra.mxu0 0.0
    %104 = vmatprep.subr.mxu0 0.0
    %105 = vmatpush1.msra.mxu0 0.0
    %106 = vmatprep.subr.mxu0 0.0
    %107 = vmatpush1.msra.mxu0 0.0
    %108 = vmatprep.subr.mxu0 0.0
    %109 = vmatpush1.msra.mxu0 0.0
    %110 = vmatprep.subr.mxu0 0.0
    %111 = vmatpush1.msra.mxu0 0.0
    %112 = vmatprep.subr.mxu0 0.0
    %113 = vmatpush1.msra.mxu0 0.0
    %114 = vmatprep.subr.mxu0 0.0
    %115 = vmatpush1.msra.mxu0 0.0
    %116 = vmatprep.subr.mxu0 0.0
    %117 = vmatpush1.msra.mxu0 0.0
    %118 = vmatprep.subr.mxu0 0.0
    %119 = vmatpush1.msra.mxu0 0.0
    %120 = vmatprep.subr.mxu0 0.0
    %121 = vmatpush1.msra.mxu0 0.0
    %122 = vmatprep.subr.mxu0 0.0
    %123 = vmatpush1.msra.mxu0 0.0
    %124 = vmatprep.subr.mxu0 0.0
    %125 = vmatpush1.msra.mxu0 0.0
    %126 = vmatprep.subr.mxu0 0.0
    %127 = vmatpush1.msra.mxu0 0.0
    %128 = vmatprep.subr.mxu0 0.0
    %129 = vmatpush1.msra.mxu0 0.0
    %130 = vmatprep.subr.mxu0 0.0
    %131 = vmatpush1.msra.mxu0 0.0
    %132 = vmatprep.subr.mxu0 0.0
    %133 = vmatpush1.msra.mxu0 0.0
    %134 = vmatprep.subr.mxu0 0.0
    %135 = vmatpush1.msra.mxu0 0.0
    %136 = vmatprep.mubr.f32.mxu0 0.0
    %137 = vmatmul.mubr.f32.gmra.mrb[0].mxu0 %v45
    %v138 = vpop.f32.mrb[0].mxu0
    %v139 = vadd.f32 %v41, %v138
    %v140 = vpop.f32.mrb[0].mxu0
    %141 = vmatprep.mubr.f32.mxu0 0.0
    %142 = vmatmul.mubr.f32.gmra.mrb[0].mxu0 %v48
    %v143 = vpop.f32.mrb[0].mxu0
    %v144 = vadd.f32 %v41, %v143
    %v145 = vpop.f32.mrb[0].mxu0
    %146 = vmatprep.mubr.f32.mxu0 0.0
    %147 = vmatmul.mubr.f32.gmra.mrb[0].mxu0 %v51
    %v148 = vpop.f32.mrb[0].mxu0
    %v149 = vadd.f32 %v41, %v148
    %v150 = vpop.f32.mrb[0].mxu0
    %151 = vmatprep.mubr.f32.mxu0 0.0
    %152 = vmatmul.mubr.f32.gmra.mrb[0].mxu0 %v54
    %v153 = vpop.f32.mrb[0].mxu0
    %v154 = vadd.f32 %v41, %v153
    %v155 = vpop.f32.mrb[0].mxu0
    %156 = vmatprep.mubr.f32.mxu0 0.0
    %157 = vmatmul.mubr.f32.gmra.mrb[0].mxu0 %v57
    %v158 = vpop.f32.mrb[0].mxu0
    %v159 = vadd.f32 %v41, %v158
    %v160 = vpop.f32.mrb[0].mxu0
    %161 = vmatprep.mubr.f32.mxu0 0.0
    %162 = vmatmul.mubr.f32.gmra.mrb[0].mxu0 %v60
    %v163 = vpop.f32.mrb[0].mxu0
    %v164 = vadd.f32 %v41, %v163
    %v165 = vpop.f32.mrb[0].mxu0
    %166 = vmatprep.mubr.f32.mxu0 0.0
    %167 = vmatmul.mubr.f32.gmra.mrb[0].mxu0 %v63
    %v168 = vpop.f32.mrb[0].mxu0
    %v169 = vadd.f32 %v41, %v168
    %v170 = vpop.f32.mrb[0].mxu0
    %171 = vmatprep.mubr.f32.mxu0 0.0
    %172 = vmatmul.mubr.f32.gmra.mrb[0].mxu0 %v66
    %v173 = vpop.f32.mrb[0].mxu0
    %v174 = vadd.f32 %v41, %v173
    %v175 = vpop.f32.mrb[0].mxu0
    %176 = vdwg.mxu0
    %177 = vst [vmem:[#allocation2] sm:$0xff] %v139
    %178 = vst [vmem:[#allocation2 + $0x8] sm:$0xff] %v144
    %179 = vst [vmem:[#allocation2 + $0x10] sm:$0xff] %v149
    %180 = vst [vmem:[#allocation2 + $0x18] sm:$0xff] %v154
    %181 = vst [vmem:[#allocation2 + $0x20] sm:$0xff] %v159
    %182 = vst [vmem:[#allocation2 + $0x28] sm:$0xff] %v164
    %183 = vst [vmem:[#allocation2 + $0x30] sm:$0xff] %v169
    %184 = vst [vmem:[#allocation2 + $0x38] sm:$0xff] %v174
    %v185 = vld [vmem:[%s1] sm:$0xff]
    %v186 = vld [vmem:[%s2] sm:$0xff]
    %v187 = vld [vmem:[%s4] sm:$0xff]
    %v188 = vld [vmem:[%s4 + $0x8] sm:$0xff]
    %v189 = vld [vmem:[%s4 + $0x10] sm:$0xff]
    %v190 = vld [vmem:[%s4 + $0x18] sm:$0xff]
    %v191 = vld [vmem:[#allocation2] sm:$0xff]
    %vm192 = vcmask 261120
    %v194 = vsel %vm192, %v185, 0
    %196 = vmatprep.subr.mxu0 0.0
    %197 = vmatpush1.msra.mxu0 %v187
    %198 = vmatprep.subr.mxu0 0.0
    %199 = vmatpush1.msra.mxu0 %v188
    %200 = vmatprep.subr.mxu0 0.0
    %201 = vmatpush1.msra.mxu0 %v189
    %202 = vmatprep.subr.mxu0 0.0
    %203 = vmatpush1.msra.mxu0 %v190
    %204 = vmatprep.subr.mxu0 0.0
    %205 = vmatpush1.msra.mxu0 0.0
    %206 = vmatprep.subr.mxu0 0.0
    %207 = vmatpush1.msra.mxu0 0.0
    %208 = vmatprep.subr.mxu0 0.0
    %209 = vmatpush1.msra.mxu0 0.0
    %210 = vmatprep.subr.mxu0 0.0
    %211 = vmatpush1.msra.mxu0 0.0
    %212 = vmatprep.subr.mxu0 0.0
    %213 = vmatpush1.msra.mxu0 0.0
    %214 = vmatprep.subr.mxu0 0.0
    %215 = vmatpush1.msra.mxu0 0.0
    %216 = vmatprep.subr.mxu0 0.0
    %217 = vmatpush1.msra.mxu0 0.0
    %218 = vmatprep.subr.mxu0 0.0
    %219 = vmatpush1.msra.mxu0 0.0
    %220 = vmatprep.subr.mxu0 0.0
    %221 = vmatpush1.msra.mxu0 0.0
    %222 = vmatprep.subr.mxu0 0.0
    %223 = vmatpush1.msra.mxu0 0.0
    %224 = vmatprep.subr.mxu0 0.0
    %225 = vmatpush1.msra.mxu0 0.0
    %226 = vmatprep.subr.mxu0 0.0
    %227 = vmatpush1.msra.mxu0 0.0
    %228 = vmatprep.subr.mxu0 0.0
    %229 = vmatpush1.msra.mxu0 0.0
    %230 = vmatprep.subr.mxu0 0.0
    %231 = vmatpush1.msra.mxu0 0.0
    %232 = vmatprep.subr.mxu0 0.0
    %233 = vmatpush1.msra.mxu0 0.0
    %234 = vmatprep.subr.mxu0 0.0
    %235 = vmatpush1.msra.mxu0 0.0
    %236 = vmatprep.subr.mxu0 0.0
    %237 = vmatpush1.msra.mxu0 0.0
    %238 = vmatprep.subr.mxu0 0.0
    %239 = vmatpush1.msra.mxu0 0.0
    %240 = vmatprep.subr.mxu0 0.0
    %241 = vmatpush1.msra.mxu0 0.0
    %242 = vmatprep.subr.mxu0 0.0
    %243 = vmatpush1.msra.mxu0 0.0
    %244 = vmatprep.subr.mxu0 0.0
    %245 = vmatpush1.msra.mxu0 0.0
    %246 = vmatprep.subr.mxu0 0.0
    %247 = vmatpush1.msra.mxu0 0.0
    %248 = vmatprep.subr.mxu0 0.0
    %249 = vmatpush1.msra.mxu0 0.0
    %250 = vmatprep.subr.mxu0 0.0
    %251 = vmatpush1.msra.mxu0 0.0
    %252 = vmatprep.subr.mxu0 0.0
    %253 = vmatpush1.msra.mxu0 0.0
    %254 = vmatprep.subr.mxu0 0.0
    %255 = vmatpush1.msra.mxu0 0.0
    %256 = vmatprep.subr.mxu0 0.0
    %257 = vmatpush1.msra.mxu0 0.0
    %258 = vmatprep.subr.mxu0 0.0
    %259 = vmatpush1.msra.mxu0 0.0
    %260 = vmatprep.mubr.f32.mxu0 0.0
    %261 = vmatmul.mubr.f32.gmra.mrb[0].mxu0 %v194
    %v262 = vpop.f32.mrb[0].mxu0
    %v263 = vadd.f32 0.0, %v262
    %v264 = vpop.f32.mrb[0].mxu0
    %265 = vdwg.mxu0
    %v266 = vadd.f32 %v191, %v263
    %v267 = vxor.u32 %v266, 2147483648
    %v268 = vmul.f32 %v267, 1.442695
    %v269 = vpow.pop %v268
    %v270 = vadd.f32 %v269, 1.0
    %v271 = vrcp.pop %v270
    %v272 = vmul.f32 1.0, %v271
    %v273 = vmul.f32 %v272, 2.0
    %v274 = vsub.f32 %v273, 1.0
    %276 = vrot.lane.b32.xlu0 %v186, 32
    %v277 = vpop.permute.xlu0 %276
    %v279 = vmul.f32 %v272, %v277
    %281 = vrot.lane.b32.xlu0 %v274, 64
    %v282 = vpop.permute.xlu0 %281
    %v284 = vmul.f32 %v272, %v282
    %286 = vrot.lane.b32.xlu0 %v284, 32
    %v287 = vpop.permute.xlu0 %286
    %v289 = vadd.f32 %v279, %v287
    %v290 = vtanh.pop %v289
    %292 = vrot.lane.b32.xlu0 %v290, 64
    %v293 = vpop.permute.xlu0 %292
    %v295 = vmul.f32 %v272, %v293
    %297 = vrot.lane.b32.xlu0 %v295, 32
    %v298 = vpop.permute.xlu0 %297
    %300 = vst.msk [vmem:[#allocation3] sm:$0xff] %vm192, %v298
    %s301 = scalar_lea.vmem [#allocation2], 8
    %v302 = vld [vmem:[%s301] sm:$0xff]
    %v303 = vsel %vm192, %v298, 0
    %305 = vmatprep.subr.mxu0 0.0
    %306 = vmatpush1.msra.mxu0 %v187
    %307 = vmatprep.subr.mxu0 0.0
    %308 = vmatpush1.msra.mxu0 %v188
    %309 = vmatprep.subr.mxu0 0.0
    %310 = vmatpush1.msra.mxu0 %v189
    %311 = vmatprep.subr.mxu0 0.0
    %312 = vmatpush1.msra.mxu0 %v190
    %313 = vmatprep.subr.mxu0 0.0
    %314 = vmatpush1.msra.mxu0 0.0
    %315 = vmatprep.subr.mxu0 0.0
    %316 = vmatpush1.msra.mxu0 0.0
    %317 = vmatprep.subr.mxu0 0.0
    %318 = vmatpush1.msra.mxu0 0.0
    %319 = vmatprep.subr.mxu0 0.0
    %320 = vmatpush1.msra.mxu0 0.0
    %321 = vmatprep.subr.mxu0 0.0
    %322 = vmatpush1.msra.mxu0 0.0
    %323 = vmatprep.subr.mxu0 0.0
    %324 = vmatpush1.msra.mxu0 0.0
    %325 = vmatprep.subr.mxu0 0.0
    %326 = vmatpush1.msra.mxu0 0.0
    %327 = vmatprep.subr.mxu0 0.0
    %328 = vmatpush1.msra.mxu0 0.0
    %329 = vmatprep.subr.mxu0 0.0
    %330 = vmatpush1.msra.mxu0 0.0
    %331 = vmatprep.subr.mxu0 0.0
    %332 = vmatpush1.msra.mxu0 0.0
    %333 = vmatprep.subr.mxu0 0.0
    %334 = vmatpush1.msra.mxu0 0.0
    %335 = vmatprep.subr.mxu0 0.0
    %336 = vmatpush1.msra.mxu0 0.0
    %337 = vmatprep.subr.mxu0 0.0
    %338 = vmatpush1.msra.mxu0 0.0
    %339 = vmatprep.subr.mxu0 0.0
    %340 = vmatpush1.msra.mxu0 0.0
    %341 = vmatprep.subr.mxu0 0.0
    %342 = vmatpush1.msra.mxu0 0.0
    %343 = vmatprep.subr.mxu0 0.0
    %344 = vmatpush1.msra.mxu0 0.0
    %345 = vmatprep.subr.mxu0 0.0
    %346 = vmatpush1.msra.mxu0 0.0
    %347 = vmatprep.subr.mxu0 0.0
    %348 = vmatpush1.msra.mxu0 0.0
    %349 = vmatprep.subr.mxu0 0.0
    %350 = vmatpush1.msra.mxu0 0.0
    %351 = vmatprep.subr.mxu0 0.0
    %352 = vmatpush1.msra.mxu0 0.0
    %353 = vmatprep.subr.mxu0 0.0
    %354 = vmatpush1.msra.mxu0 0.0
    %355 = vmatprep.subr.mxu0 0.0
    %356 = vmatpush1.msra.mxu0 0.0
    %357 = vmatprep.subr.mxu0 0.0
    %358 = vmatpush1.msra.mxu0 0.0
    %359 = vmatprep.subr.mxu0 0.0
    %360 = vmatpush1.msra.mxu0 0.0
    %361 = vmatprep.subr.mxu0 0.0
    %362 = vmatpush1.msra.mxu0 0.0
    %363 = vmatprep.subr.mxu0 0.0
    %364 = vmatpush1.msra.mxu0 0.0
    %365 = vmatprep.subr.mxu0 0.0
    %366 = vmatpush1.msra.mxu0 0.0
    %367 = vmatprep.subr.mxu0 0.0
    %368 = vmatpush1.msra.mxu0 0.0
    %369 = vmatprep.mubr.f32.mxu0 0.0
    %370 = vmatmul.mubr.f32.gmra.mrb[0].mxu0 %v303
    %v371 = vpop.f32.mrb[0].mxu0
    %v372 = vadd.f32 0.0, %v371
    %v373 = vpop.f32.mrb[0].mxu0
    %374 = vdwg.mxu0
    %v375 = vadd.f32 %v302, %v372
    %v376 = vxor.u32 %v375, 2147483648
    %v377 = vmul.f32 %v376, 1.442695
    %v378 = vpow.pop %v377
    %v379 = vadd.f32 %v378, 1.0
    %v380 = vrcp.pop %v379
    %v381 = vmul.f32 1.0, %v380
    %v382 = vmul.f32 %v381, 2.0
    %v383 = vsub.f32 %v382, 1.0
    %v384 = vmul.f32 %v381, %v289
    %386 = vrot.lane.b32.xlu0 %v383, 64
    %v387 = vpop.permute.xlu0 %386
    %v389 = vmul.f32 %v381, %v387
    %391 = vrot.lane.b32.xlu0 %v389, 32
    %v392 = vpop.permute.xlu0 %391
    %v394 = vadd.f32 %v384, %v392
    %v395 = vtanh.pop %v394
    %397 = vrot.lane.b32.xlu0 %v395, 64
    %v398 = vpop.permute.xlu0 %397
    %v400 = vmul.f32 %v381, %v398
    %402 = vrot.lane.b32.xlu0 %v400, 32
    %v403 = vpop.permute.xlu0 %402
    %s405 = scalar_lea.vmem [#allocation3], 8
    %406 = vst.msk [vmem:[%s405] sm:$0xff] %vm192, %v403
    %s407 = scalar_lea.vmem [#allocation2], 16
    %v408 = vld [vmem:[%s407] sm:$0xff]
    %v409 = vsel %vm192, %v403, 0
    %411 = vmatprep.subr.mxu0 0.0
    %412 = vmatpush1.msra.mxu0 %v187
    %413 = vmatprep.subr.mxu0 0.0
    %414 = vmatpush1.msra.mxu0 %v188
    %415 = vmatprep.subr.mxu0 0.0
    %416 = vmatpush1.msra.mxu0 %v189
    %417 = vmatprep.subr.mxu0 0.0
    %418 = vmatpush1.msra.mxu0 %v190
    %419 = vmatprep.subr.mxu0 0.0
    %420 = vmatpush1.msra.mxu0 0.0
    %421 = vmatprep.subr.mxu0 0.0
    %422 = vmatpush1.msra.mxu0 0.0
    %423 = vmatprep.subr.mxu0 0.0
    %424 = vmatpush1.msra.mxu0 0.0
    %425 = vmatprep.subr.mxu0 0.0
    %426 = vmatpush1.msra.mxu0 0.0
    %427 = vmatprep.subr.mxu0 0.0
    %428 = vmatpush1.msra.mxu0 0.0
    %429 = vmatprep.subr.mxu0 0.0
    %430 = vmatpush1.msra.mxu0 0.0
    %431 = vmatprep.subr.mxu0 0.0
    %432 = vmatpush1.msra.mxu0 0.0
    %433 = vmatprep.subr.mxu0 0.0
    %434 = vmatpush1.msra.mxu0 0.0
    %435 = vmatprep.subr.mxu0 0.0
    %436 = vmatpush1.msra.mxu0 0.0
    %437 = vmatprep.subr.mxu0 0.0
    %438 = vmatpush1.msra.mxu0 0.0
    %439 = vmatprep.subr.mxu0 0.0
    %440 = vmatpush1.msra.mxu0 0.0
    %441 = vmatprep.subr.mxu0 0.0
    %442 = vmatpush1.msra.mxu0 0.0
    %443 = vmatprep.subr.mxu0 0.0
    %444 = vmatpush1.msra.mxu0 0.0
    %445 = vmatprep.subr.mxu0 0.0
    %446 = vmatpush1.msra.mxu0 0.0
    %447 = vmatprep.subr.mxu0 0.0
    %448 = vmatpush1.msra.mxu0 0.0
    %449 = vmatprep.subr.mxu0 0.0
    %450 = vmatpush1.msra.mxu0 0.0
    %451 = vmatprep.subr.mxu0 0.0
    %452 = vmatpush1.msra.mxu0 0.0
    %453 = vmatprep.subr.mxu0 0.0
    %454 = vmatpush1.msra.mxu0 0.0
    %455 = vmatprep.subr.mxu0 0.0
    %456 = vmatpush1.msra.mxu0 0.0
    %457 = vmatprep.subr.mxu0 0.0
    %458 = vmatpush1.msra.mxu0 0.0
    %459 = vmatprep.subr.mxu0 0.0
    %460 = vmatpush1.msra.mxu0 0.0
    %461 = vmatprep.subr.mxu0 0.0
    %462 = vmatpush1.msra.mxu0 0.0
    %463 = vmatprep.subr.mxu0 0.0
    %464 = vmatpush1.msra.mxu0 0.0
    %465 = vmatprep.subr.mxu0 0.0
    %466 = vmatpush1.msra.mxu0 0.0
    %467 = vmatprep.subr.mxu0 0.0
    %468 = vmatpush1.msra.mxu0 0.0
    %469 = vmatprep.subr.mxu0 0.0
    %470 = vmatpush1.msra.mxu0 0.0
    %471 = vmatprep.subr.mxu0 0.0
    %472 = vmatpush1.msra.mxu0 0.0
    %473 = vmatprep.subr.mxu0 0.0
    %474 = vmatpush1.msra.mxu0 0.0
    %475 = vmatprep.mubr.f32.mxu0 0.0
    %476 = vmatmul.mubr.f32.gmra.mrb[0].mxu0 %v409
    %v477 = vpop.f32.mrb[0].mxu0
    %v478 = vadd.f32 0.0, %v477
    %v479 = vpop.f32.mrb[0].mxu0
    %480 = vdwg.mxu0
    %v481 = vadd.f32 %v408, %v478
    %v482 = vxor.u32 %v481, 2147483648
    %v483 = vmul.f32 %v482, 1.442695
    %v484 = vpow.pop %v483
    %v485 = vadd.f32 %v484, 1.0
    %v486 = vrcp.pop %v485
    %v487 = vmul.f32 1.0, %v486
    %v488 = vmul.f32 %v487, 2.0
    %v489 = vsub.f32 %v488, 1.0
    %v490 = vmul.f32 %v487, %v394
    %492 = vrot.lane.b32.xlu0 %v489, 64
    %v493 = vpop.permute.xlu0 %492
    %v495 = vmul.f32 %v487, %v493
    %497 = vrot.lane.b32.xlu0 %v495, 32
    %v498 = vpop.permute.xlu0 %497
    %v500 = vadd.f32 %v490, %v498
    %v501 = vtanh.pop %v500
    %503 = vrot.lane.b32.xlu0 %v501, 64
    %v504 = vpop.permute.xlu0 %503
    %v506 = vmul.f32 %v487, %v504
    %508 = vrot.lane.b32.xlu0 %v506, 32
    %v509 = vpop.permute.xlu0 %508
    %s511 = scalar_lea.vmem [#allocation3], 16
    %512 = vst.msk [vmem:[%s511] sm:$0xff] %vm192, %v509
    %s513 = scalar_lea.vmem [#allocation2], 24
    %v514 = vld [vmem:[%s513] sm:$0xff]
    %v515 = vsel %vm192, %v509, 0
    %517 = vmatprep.subr.mxu0 0.0
    %518 = vmatpush1.msra.mxu0 %v187
    %519 = vmatprep.subr.mxu0 0.0
    %520 = vmatpush1.msra.mxu0 %v188
    %521 = vmatprep.subr.mxu0 0.0
    %522 = vmatpush1.msra.mxu0 %v189
    %523 = vmatprep.subr.mxu0 0.0
    %524 = vmatpush1.msra.mxu0 %v190
    %525 = vmatprep.subr.mxu0 0.0
    %526 = vmatpush1.msra.mxu0 0.0
    %527 = vmatprep.subr.mxu0 0.0
    %528 = vmatpush1.msra.mxu0 0.0
    %529 = vmatprep.subr.mxu0 0.0
    %530 = vmatpush1.msra.mxu0 0.0
    %531 = vmatprep.subr.mxu0 0.0
    %532 = vmatpush1.msra.mxu0 0.0
    %533 = vmatprep.subr.mxu0 0.0
    %534 = vmatpush1.msra.mxu0 0.0
    %535 = vmatprep.subr.mxu0 0.0
    %536 = vmatpush1.msra.mxu0 0.0
    %537 = vmatprep.subr.mxu0 0.0
    %538 = vmatpush1.msra.mxu0 0.0
    %539 = vmatprep.subr.mxu0 0.0
    %540 = vmatpush1.msra.mxu0 0.0
    %541 = vmatprep.subr.mxu0 0.0
    %542 = vmatpush1.msra.mxu0 0.0
    %543 = vmatprep.subr.mxu0 0.0
    %544 = vmatpush1.msra.mxu0 0.0
    %545 = vmatprep.subr.mxu0 0.0
    %546 = vmatpush1.msra.mxu0 0.0
    %547 = vmatprep.subr.mxu0 0.0
    %548 = vmatpush1.msra.mxu0 0.0
    %549 = vmatprep.subr.mxu0 0.0
    %550 = vmatpush1.msra.mxu0 0.0
    %551 = vmatprep.subr.mxu0 0.0
    %552 = vmatpush1.msra.mxu0 0.0
    %553 = vmatprep.subr.mxu0 0.0
    %554 = vmatpush1.msra.mxu0 0.0
    %555 = vmatprep.subr.mxu0 0.0
    %556 = vmatpush1.msra.mxu0 0.0
    %557 = vmatprep.subr.mxu0 0.0
    %558 = vmatpush1.msra.mxu0 0.0
    %559 = vmatprep.subr.mxu0 0.0
    %560 = vmatpush1.msra.mxu0 0.0
    %561 = vmatprep.subr.mxu0 0.0
    %562 = vmatpush1.msra.mxu0 0.0
    %563 = vmatprep.subr.mxu0 0.0
    %564 = vmatpush1.msra.mxu0 0.0
    %565 = vmatprep.subr.mxu0 0.0
    %566 = vmatpush1.msra.mxu0 0.0
    %567 = vmatprep.subr.mxu0 0.0
    %568 = vmatpush1.msra.mxu0 0.0
    %569 = vmatprep.subr.mxu0 0.0
    %570 = vmatpush1.msra.mxu0 0.0
    %571 = vmatprep.subr.mxu0 0.0
    %572 = vmatpush1.msra.mxu0 0.0
    %573 = vmatprep.subr.mxu0 0.0
    %574 = vmatpush1.msra.mxu0 0.0
    %575 = vmatprep.subr.mxu0 0.0
    %576 = vmatpush1.msra.mxu0 0.0
    %577 = vmatprep.subr.mxu0 0.0
    %578 = vmatpush1.msra.mxu0 0.0
    %579 = vmatprep.subr.mxu0 0.0
    %580 = vmatpush1.msra.mxu0 0.0
    %581 = vmatprep.mubr.f32.mxu0 0.0
    %582 = vmatmul.mubr.f32.gmra.mrb[0].mxu0 %v515
    %v583 = vpop.f32.mrb[0].mxu0
    %v584 = vadd.f32 0.0, %v583
    %v585 = vpop.f32.mrb[0].mxu0
    %586 = vdwg.mxu0
    %v587 = vadd.f32 %v514, %v584
    %v588 = vxor.u32 %v587, 2147483648
    %v589 = vmul.f32 %v588, 1.442695
    %v590 = vpow.pop %v589
    %v591 = vadd.f32 %v590, 1.0
    %v592 = vrcp.pop %v591
    %v593 = vmul.f32 1.0, %v592
    %v594 = vmul.f32 %v593, 2.0
    %v595 = vsub.f32 %v594, 1.0
    %v596 = vmul.f32 %v593, %v500
    %598 = vrot.lane.b32.xlu0 %v595, 64
    %v599 = vpop.permute.xlu0 %598
    %v601 = vmul.f32 %v593, %v599
    %603 = vrot.lane.b32.xlu0 %v601, 32
    %v604 = vpop.permute.xlu0 %603
    %v606 = vadd.f32 %v596, %v604
    %v607 = vtanh.pop %v606
    %609 = vrot.lane.b32.xlu0 %v607, 64
    %v610 = vpop.permute.xlu0 %609
    %v612 = vmul.f32 %v593, %v610
    %614 = vrot.lane.b32.xlu0 %v612, 32
    %v615 = vpop.permute.xlu0 %614
    %s617 = scalar_lea.vmem [#allocation3], 24
    %618 = vst.msk [vmem:[%s617] sm:$0xff] %vm192, %v615
    %s619 = scalar_lea.vmem [#allocation2], 32
    %v620 = vld [vmem:[%s619] sm:$0xff]
    %v621 = vsel %vm192, %v615, 0
    %623 = vmatprep.subr.mxu0 0.0
    %624 = vmatpush1.msra.mxu0 %v187
    %625 = vmatprep.subr.mxu0 0.0
    %626 = vmatpush1.msra.mxu0 %v188
    %627 = vmatprep.subr.mxu0 0.0
    %628 = vmatpush1.msra.mxu0 %v189
    %629 = vmatprep.subr.mxu0 0.0
    %630 = vmatpush1.msra.mxu0 %v190
    %631 = vmatprep.subr.mxu0 0.0
    %632 = vmatpush1.msra.mxu0 0.0
    %633 = vmatprep.subr.mxu0 0.0
    %634 = vmatpush1.msra.mxu0 0.0
    %635 = vmatprep.subr.mxu0 0.0
    %636 = vmatpush1.msra.mxu0 0.0
    %637 = vmatprep.subr.mxu0 0.0
    %638 = vmatpush1.msra.mxu0 0.0
    %639 = vmatprep.subr.mxu0 0.0
    %640 = vmatpush1.msra.mxu0 0.0
    %641 = vmatprep.subr.mxu0 0.0
    %642 = vmatpush1.msra.mxu0 0.0
    %643 = vmatprep.subr.mxu0 0.0
    %644 = vmatpush1.msra.mxu0 0.0
    %645 = vmatprep.subr.mxu0 0.0
    %646 = vmatpush1.msra.mxu0 0.0
    %647 = vmatprep.subr.mxu0 0.0
    %648 = vmatpush1.msra.mxu0 0.0
    %649 = vmatprep.subr.mxu0 0.0
    %650 = vmatpush1.msra.mxu0 0.0
    %651 = vmatprep.subr.mxu0 0.0
    %652 = vmatpush1.msra.mxu0 0.0
    %653 = vmatprep.subr.mxu0 0.0
    %654 = vmatpush1.msra.mxu0 0.0
    %655 = vmatprep.subr.mxu0 0.0
    %656 = vmatpush1.msra.mxu0 0.0
    %657 = vmatprep.subr.mxu0 0.0
    %658 = vmatpush1.msra.mxu0 0.0
    %659 = vmatprep.subr.mxu0 0.0
    %660 = vmatpush1.msra.mxu0 0.0
    %661 = vmatprep.subr.mxu0 0.0
    %662 = vmatpush1.msra.mxu0 0.0
    %663 = vmatprep.subr.mxu0 0.0
    %664 = vmatpush1.msra.mxu0 0.0
    %665 = vmatprep.subr.mxu0 0.0
    %666 = vmatpush1.msra.mxu0 0.0
    %667 = vmatprep.subr.mxu0 0.0
    %668 = vmatpush1.msra.mxu0 0.0
    %669 = vmatprep.subr.mxu0 0.0
    %670 = vmatpush1.msra.mxu0 0.0
    %671 = vmatprep.subr.mxu0 0.0
    %672 = vmatpush1.msra.mxu0 0.0
    %673 = vmatprep.subr.mxu0 0.0
    %674 = vmatpush1.msra.mxu0 0.0
    %675 = vmatprep.subr.mxu0 0.0
    %676 = vmatpush1.msra.mxu0 0.0
    %677 = vmatprep.subr.mxu0 0.0
    %678 = vmatpush1.msra.mxu0 0.0
    %679 = vmatprep.subr.mxu0 0.0
    %680 = vmatpush1.msra.mxu0 0.0
    %681 = vmatprep.subr.mxu0 0.0
    %682 = vmatpush1.msra.mxu0 0.0
    %683 = vmatprep.subr.mxu0 0.0
    %684 = vmatpush1.msra.mxu0 0.0
    %685 = vmatprep.subr.mxu0 0.0
    %686 = vmatpush1.msra.mxu0 0.0
    %687 = vmatprep.mubr.f32.mxu0 0.0
    %688 = vmatmul.mubr.f32.gmra.mrb[0].mxu0 %v621
    %v689 = vpop.f32.mrb[0].mxu0
    %v690 = vadd.f32 0.0, %v689
    %v691 = vpop.f32.mrb[0].mxu0
    %692 = vdwg.mxu0
    %v693 = vadd.f32 %v620, %v690
    %v694 = vxor.u32 %v693, 2147483648
    %v695 = vmul.f32 %v694, 1.442695
    %v696 = vpow.pop %v695
    %v697 = vadd.f32 %v696, 1.0
    %v698 = vrcp.pop %v697
    %v699 = vmul.f32 1.0, %v698
    %v700 = vmul.f32 %v699, 2.0
    %v701 = vsub.f32 %v700, 1.0
    %v702 = vmul.f32 %v699, %v606
    %704 = vrot.lane.b32.xlu0 %v701, 64
    %v705 = vpop.permute.xlu0 %704
    %v707 = vmul.f32 %v699, %v705
    %709 = vrot.lane.b32.xlu0 %v707, 32
    %v710 = vpop.permute.xlu0 %709
    %v712 = vadd.f32 %v702, %v710
    %v713 = vtanh.pop %v712
    %715 = vrot.lane.b32.xlu0 %v713, 64
    %v716 = vpop.permute.xlu0 %715
    %v718 = vmul.f32 %v699, %v716
    %720 = vrot.lane.b32.xlu0 %v718, 32
    %v721 = vpop.permute.xlu0 %720
    %s723 = scalar_lea.vmem [#allocation3], 32
    %724 = vst.msk [vmem:[%s723] sm:$0xff] %vm192, %v721
    %s725 = scalar_lea.vmem [#allocation2], 40
    %v726 = vld [vmem:[%s725] sm:$0xff]
    %v727 = vsel %vm192, %v721, 0
    %729 = vmatprep.subr.mxu0 0.0
    %730 = vmatpush1.msra.mxu0 %v187
    %731 = vmatprep.subr.mxu0 0.0
    %732 = vmatpush1.msra.mxu0 %v188
    %733 = vmatprep.subr.mxu0 0.0
    %734 = vmatpush1.msra.mxu0 %v189
    %735 = vmatprep.subr.mxu0 0.0
    %736 = vmatpush1.msra.mxu0 %v190
    %737 = vmatprep.subr.mxu0 0.0
    %738 = vmatpush1.msra.mxu0 0.0
    %739 = vmatprep.subr.mxu0 0.0
    %740 = vmatpush1.msra.mxu0 0.0
    %741 = vmatprep.subr.mxu0 0.0
    %742 = vmatpush1.msra.mxu0 0.0
    %743 = vmatprep.subr.mxu0 0.0
    %744 = vmatpush1.msra.mxu0 0.0
    %745 = vmatprep.subr.mxu0 0.0
    %746 = vmatpush1.msra.mxu0 0.0
    %747 = vmatprep.subr.mxu0 0.0
    %748 = vmatpush1.msra.mxu0 0.0
    %749 = vmatprep.subr.mxu0 0.0
    %750 = vmatpush1.msra.mxu0 0.0
    %751 = vmatprep.subr.mxu0 0.0
    %752 = vmatpush1.msra.mxu0 0.0
    %753 = vmatprep.subr.mxu0 0.0
    %754 = vmatpush1.msra.mxu0 0.0
    %755 = vmatprep.subr.mxu0 0.0
    %756 = vmatpush1.msra.mxu0 0.0
    %757 = vmatprep.subr.mxu0 0.0
    %758 = vmatpush1.msra.mxu0 0.0
    %759 = vmatprep.subr.mxu0 0.0
    %760 = vmatpush1.msra.mxu0 0.0
    %761 = vmatprep.subr.mxu0 0.0
    %762 = vmatpush1.msra.mxu0 0.0
    %763 = vmatprep.subr.mxu0 0.0
    %764 = vmatpush1.msra.mxu0 0.0
    %765 = vmatprep.subr.mxu0 0.0
    %766 = vmatpush1.msra.mxu0 0.0
    %767 = vmatprep.subr.mxu0 0.0
    %768 = vmatpush1.msra.mxu0 0.0
    %769 = vmatprep.subr.mxu0 0.0
    %770 = vmatpush1.msra.mxu0 0.0
    %771 = vmatprep.subr.mxu0 0.0
    %772 = vmatpush1.msra.mxu0 0.0
    %773 = vmatprep.subr.mxu0 0.0
    %774 = vmatpush1.msra.mxu0 0.0
    %775 = vmatprep.subr.mxu0 0.0
    %776 = vmatpush1.msra.mxu0 0.0
    %777 = vmatprep.subr.mxu0 0.0
    %778 = vmatpush1.msra.mxu0 0.0
    %779 = vmatprep.subr.mxu0 0.0
    %780 = vmatpush1.msra.mxu0 0.0
    %781 = vmatprep.subr.mxu0 0.0
    %782 = vmatpush1.msra.mxu0 0.0
    %783 = vmatprep.subr.mxu0 0.0
    %784 = vmatpush1.msra.mxu0 0.0
    %785 = vmatprep.subr.mxu0 0.0
    %786 = vmatpush1.msra.mxu0 0.0
    %787 = vmatprep.subr.mxu0 0.0
    %788 = vmatpush1.msra.mxu0 0.0
    %789 = vmatprep.subr.mxu0 0.0
    %790 = vmatpush1.msra.mxu0 0.0
    %791 = vmatprep.subr.mxu0 0.0
    %792 = vmatpush1.msra.mxu0 0.0
    %793 = vmatprep.mubr.f32.mxu0 0.0
    %794 = vmatmul.mubr.f32.gmra.mrb[0].mxu0 %v727
    %v795 = vpop.f32.mrb[0].mxu0
    %v796 = vadd.f32 0.0, %v795
    %v797 = vpop.f32.mrb[0].mxu0
    %798 = vdwg.mxu0
    %v799 = vadd.f32 %v726, %v796
    %v800 = vxor.u32 %v799, 2147483648
    %v801 = vmul.f32 %v800, 1.442695
    %v802 = vpow.pop %v801
    %v803 = vadd.f32 %v802, 1.0
    %v804 = vrcp.pop %v803
    %v805 = vmul.f32 1.0, %v804
    %v806 = vmul.f32 %v805, 2.0
    %v807 = vsub.f32 %v806, 1.0
    %v808 = vmul.f32 %v805, %v712
    %810 = vrot.lane.b32.xlu0 %v807, 64
    %v811 = vpop.permute.xlu0 %810
    %v813 = vmul.f32 %v805, %v811
    %815 = vrot.lane.b32.xlu0 %v813, 32
    %v816 = vpop.permute.xlu0 %815
    %v818 = vadd.f32 %v808, %v816
    %v819 = vtanh.pop %v818
    %821 = vrot.lane.b32.xlu0 %v819, 64
    %v822 = vpop.permute.xlu0 %821
    %v824 = vmul.f32 %v805, %v822
    %826 = vrot.lane.b32.xlu0 %v824, 32
    %v827 = vpop.permute.xlu0 %826
    %s829 = scalar_lea.vmem [#allocation3], 40
    %830 = vst.msk [vmem:[%s829] sm:$0xff] %vm192, %v827
    %s831 = scalar_lea.vmem [#allocation2], 48
    %v832 = vld [vmem:[%s831] sm:$0xff]
    %v833 = vsel %vm192, %v827, 0
    %835 = vmatprep.subr.mxu0 0.0
    %836 = vmatpush1.msra.mxu0 %v187
    %837 = vmatprep.subr.mxu0 0.0
    %838 = vmatpush1.msra.mxu0 %v188
    %839 = vmatprep.subr.mxu0 0.0
    %840 = vmatpush1.msra.mxu0 %v189
    %841 = vmatprep.subr.mxu0 0.0
    %842 = vmatpush1.msra.mxu0 %v190
    %843 = vmatprep.subr.mxu0 0.0
    %844 = vmatpush1.msra.mxu0 0.0
    %845 = vmatprep.subr.mxu0 0.0
    %846 = vmatpush1.msra.mxu0 0.0
    %847 = vmatprep.subr.mxu0 0.0
    %848 = vmatpush1.msra.mxu0 0.0
    %849 = vmatprep.subr.mxu0 0.0
    %850 = vmatpush1.msra.mxu0 0.0
    %851 = vmatprep.subr.mxu0 0.0
    %852 = vmatpush1.msra.mxu0 0.0
    %853 = vmatprep.subr.mxu0 0.0
    %854 = vmatpush1.msra.mxu0 0.0
    %855 = vmatprep.subr.mxu0 0.0
    %856 = vmatpush1.msra.mxu0 0.0
    %857 = vmatprep.subr.mxu0 0.0
    %858 = vmatpush1.msra.mxu0 0.0
    %859 = vmatprep.subr.mxu0 0.0
    %860 = vmatpush1.msra.mxu0 0.0
    %861 = vmatprep.subr.mxu0 0.0
    %862 = vmatpush1.msra.mxu0 0.0
    %863 = vmatprep.subr.mxu0 0.0
    %864 = vmatpush1.msra.mxu0 0.0
    %865 = vmatprep.subr.mxu0 0.0
    %866 = vmatpush1.msra.mxu0 0.0
    %867 = vmatprep.subr.mxu0 0.0
    %868 = vmatpush1.msra.mxu0 0.0
    %869 = vmatprep.subr.mxu0 0.0
    %870 = vmatpush1.msra.mxu0 0.0
    %871 = vmatprep.subr.mxu0 0.0
    %872 = vmatpush1.msra.mxu0 0.0
    %873 = vmatprep.subr.mxu0 0.0
    %874 = vmatpush1.msra.mxu0 0.0
    %875 = vmatprep.subr.mxu0 0.0
    %876 = vmatpush1.msra.mxu0 0.0
    %877 = vmatprep.subr.mxu0 0.0
    %878 = vmatpush1.msra.mxu0 0.0
    %879 = vmatprep.subr.mxu0 0.0
    %880 = vmatpush1.msra.mxu0 0.0
    %881 = vmatprep.subr.mxu0 0.0
    %882 = vmatpush1.msra.mxu0 0.0
    %883 = vmatprep.subr.mxu0 0.0
    %884 = vmatpush1.msra.mxu0 0.0
    %885 = vmatprep.subr.mxu0 0.0
    %886 = vmatpush1.msra.mxu0 0.0
    %887 = vmatprep.subr.mxu0 0.0
    %888 = vmatpush1.msra.mxu0 0.0
    %889 = vmatprep.subr.mxu0 0.0
    %890 = vmatpush1.msra.mxu0 0.0
    %891 = vmatprep.subr.mxu0 0.0
    %892 = vmatpush1.msra.mxu0 0.0
    %893 = vmatprep.subr.mxu0 0.0
    %894 = vmatpush1.msra.mxu0 0.0
    %895 = vmatprep.subr.mxu0 0.0
    %896 = vmatpush1.msra.mxu0 0.0
    %897 = vmatprep.subr.mxu0 0.0
    %898 = vmatpush1.msra.mxu0 0.0
    %899 = vmatprep.mubr.f32.mxu0 0.0
    %900 = vmatmul.mubr.f32.gmra.mrb[0].mxu0 %v833
    %v901 = vpop.f32.mrb[0].mxu0
    %v902 = vadd.f32 0.0, %v901
    %v903 = vpop.f32.mrb[0].mxu0
    %904 = vdwg.mxu0
    %v905 = vadd.f32 %v832, %v902
    %v906 = vxor.u32 %v905, 2147483648
    %v907 = vmul.f32 %v906, 1.442695
    %v908 = vpow.pop %v907
    %v909 = vadd.f32 %v908, 1.0
    %v910 = vrcp.pop %v909
    %v911 = vmul.f32 1.0, %v910
    %v912 = vmul.f32 %v911, 2.0
    %v913 = vsub.f32 %v912, 1.0
    %v914 = vmul.f32 %v911, %v818
    %916 = vrot.lane.b32.xlu0 %v913, 64
    %v917 = vpop.permute.xlu0 %916
    %v919 = vmul.f32 %v911, %v917
    %921 = vrot.lane.b32.xlu0 %v919, 32
    %v922 = vpop.permute.xlu0 %921
    %v924 = vadd.f32 %v914, %v922
    %v925 = vtanh.pop %v924
    %927 = vrot.lane.b32.xlu0 %v925, 64
    %v928 = vpop.permute.xlu0 %927
    %v930 = vmul.f32 %v911, %v928
    %932 = vrot.lane.b32.xlu0 %v930, 32
    %v933 = vpop.permute.xlu0 %932
    %s935 = scalar_lea.vmem [#allocation3], 48
    %936 = vst.msk [vmem:[%s935] sm:$0xff] %vm192, %v933
    %s937 = scalar_lea.vmem [#allocation2], 56
    %v938 = vld [vmem:[%s937] sm:$0xff]
    %v939 = vsel %vm192, %v933, 0
    %941 = vmatprep.subr.mxu0 0.0
    %942 = vmatpush1.msra.mxu0 %v187
    %943 = vmatprep.subr.mxu0 0.0
    %944 = vmatpush1.msra.mxu0 %v188
    %945 = vmatprep.subr.mxu0 0.0
    %946 = vmatpush1.msra.mxu0 %v189
    %947 = vmatprep.subr.mxu0 0.0
    %948 = vmatpush1.msra.mxu0 %v190
    %949 = vmatprep.subr.mxu0 0.0
    %950 = vmatpush1.msra.mxu0 0.0
    %951 = vmatprep.subr.mxu0 0.0
    %952 = vmatpush1.msra.mxu0 0.0
    %953 = vmatprep.subr.mxu0 0.0
    %954 = vmatpush1.msra.mxu0 0.0
    %955 = vmatprep.subr.mxu0 0.0
    %956 = vmatpush1.msra.mxu0 0.0
    %957 = vmatprep.subr.mxu0 0.0
    %958 = vmatpush1.msra.mxu0 0.0
    %959 = vmatprep.subr.mxu0 0.0
    %960 = vmatpush1.msra.mxu0 0.0
    %961 = vmatprep.subr.mxu0 0.0
    %962 = vmatpush1.msra.mxu0 0.0
    %963 = vmatprep.subr.mxu0 0.0
    %964 = vmatpush1.msra.mxu0 0.0
    %965 = vmatprep.subr.mxu0 0.0
    %966 = vmatpush1.msra.mxu0 0.0
    %967 = vmatprep.subr.mxu0 0.0
    %968 = vmatpush1.msra.mxu0 0.0
    %969 = vmatprep.subr.mxu0 0.0
    %970 = vmatpush1.msra.mxu0 0.0
    %971 = vmatprep.subr.mxu0 0.0
    %972 = vmatpush1.msra.mxu0 0.0
    %973 = vmatprep.subr.mxu0 0.0
    %974 = vmatpush1.msra.mxu0 0.0
    %975 = vmatprep.subr.mxu0 0.0
    %976 = vmatpush1.msra.mxu0 0.0
    %977 = vmatprep.subr.mxu0 0.0
    %978 = vmatpush1.msra.mxu0 0.0
    %979 = vmatprep.subr.mxu0 0.0
    %980 = vmatpush1.msra.mxu0 0.0
    %981 = vmatprep.subr.mxu0 0.0
    %982 = vmatpush1.msra.mxu0 0.0
    %983 = vmatprep.subr.mxu0 0.0
    %984 = vmatpush1.msra.mxu0 0.0
    %985 = vmatprep.subr.mxu0 0.0
    %986 = vmatpush1.msra.mxu0 0.0
    %987 = vmatprep.subr.mxu0 0.0
    %988 = vmatpush1.msra.mxu0 0.0
    %989 = vmatprep.subr.mxu0 0.0
    %990 = vmatpush1.msra.mxu0 0.0
    %991 = vmatprep.subr.mxu0 0.0
    %992 = vmatpush1.msra.mxu0 0.0
    %993 = vmatprep.subr.mxu0 0.0
    %994 = vmatpush1.msra.mxu0 0.0
    %995 = vmatprep.subr.mxu0 0.0
    %996 = vmatpush1.msra.mxu0 0.0
    %997 = vmatprep.subr.mxu0 0.0
    %998 = vmatpush1.msra.mxu0 0.0
    %999 = vmatprep.subr.mxu0 0.0
    %1000 = vmatpush1.msra.mxu0 0.0
    %1001 = vmatprep.subr.mxu0 0.0
    %1002 = vmatpush1.msra.mxu0 0.0
    %1003 = vmatprep.subr.mxu0 0.0
    %1004 = vmatpush1.msra.mxu0 0.0
    %1005 = vmatprep.mubr.f32.mxu0 0.0
    %1006 = vmatmul.mubr.f32.gmra.mrb[0].mxu0 %v939
    %v1007 = vpop.f32.mrb[0].mxu0
    %v1008 = vadd.f32 0.0, %v1007
    %v1009 = vpop.f32.mrb[0].mxu0
    %1010 = vdwg.mxu0
    %v1011 = vadd.f32 %v938, %v1008
    %v1012 = vxor.u32 %v1011, 2147483648
    %v1013 = vmul.f32 %v1012, 1.442695
    %v1014 = vpow.pop %v1013
    %v1015 = vadd.f32 %v1014, 1.0
    %v1016 = vrcp.pop %v1015
    %v1017 = vmul.f32 1.0, %v1016
    %v1018 = vmul.f32 %v1017, 2.0
    %v1019 = vsub.f32 %v1018, 1.0
    %v1020 = vmul.f32 %v1017, %v924
    %1022 = vrot.lane.b32.xlu0 %v1019, 64
    %v1023 = vpop.permute.xlu0 %1022
    %v1025 = vmul.f32 %v1017, %v1023
    %1027 = vrot.lane.b32.xlu0 %v1025, 32
    %v1028 = vpop.permute.xlu0 %1027
    %v1030 = vadd.f32 %v1020, %v1028
    %v1031 = vtanh.pop %v1030
    %1033 = vrot.lane.b32.xlu0 %v1031, 64
    %v1034 = vpop.permute.xlu0 %1033
    %v1036 = vmul.f32 %v1017, %v1034
    %1038 = vrot.lane.b32.xlu0 %v1036, 32
    %v1039 = vpop.permute.xlu0 %1038
    %s1041 = scalar_lea.vmem [#allocation3], 56
    %1042 = vst.msk [vmem:[%s1041] sm:$0xff] %vm192, %v1039
    %1044 = vrot.lane.b32.xlu0 %v1030, 96
    %v1045 = vpop.permute.xlu0 %1044
    %1047 = vst.msk [vmem:[#allocation5] sm:$0xff] %vm192, %v1045
    // Predicated region
    $region26: #{tpu_custom_call.1} parent=1 // pred_check
      _
    $region27: #{tpu_custom_call.1} parent=1 // pred_check_branch
      %1049 = sbr.rel (0) target = $region29
    $region28: #{tpu_custom_call.1} parent=1 // pred_region
      %s1051 = ssub.s32 1024, 1024
      %1052 = vsyncadd [#allocation4], %s1051
      %s1053 = sshll.u32 [#allocation3], 4
      %s1054 = int_to_ptr.vmem [resolvable:$true] %s1053
      %1059 = dma.vmem_to_hbm [thread:$0]  %s1054, 1024, %s6, [#allocation4], 128, 128, 8
    $region29: #{tpu_custom_call.1} parent=1 // pred_fallthru
      _
    // Predicated region
    $region30: #{tpu_custom_call.1} parent=1 // pred_check
      _
    $region31: #{tpu_custom_call.1} parent=1 // pred_check_branch
      %1061 = sbr.rel (0) target = $region33
    $region32: #{tpu_custom_call.1} parent=1 // pred_region
      %s1063 = ssub.s32 128, 128
      %1064 = vsyncadd [#allocation6], %s1063
      %s1066 = sshll.u32 [#allocation5], 4
      %s1067 = int_to_ptr.vmem [resolvable:$true] %s1066
      %1069 = dma.vmem_to_hbm [thread:$0]  %s1067, 128, %s7, [#allocation6]
    $region33: #{tpu_custom_call.1} parent=1 // pred_fallthru
      _
    // Predicated region
    $region34: #{tpu_custom_call.1} parent=1 // pred_check
      _
    $region35: #{tpu_custom_call.1} parent=1 // pred_check_branch
      %1071 = sbr.rel (0) target = $region37
    $region36: #{tpu_custom_call.1} parent=1 // pred_region
      %1072 = dma.done [#allocation4], 1024
    $region37: #{tpu_custom_call.1} parent=1 // pred_fallthru
      _
    // Predicated region
    $region38: #{tpu_custom_call.1} parent=1 // pred_check
      _
    $region39: #{tpu_custom_call.1} parent=1 // pred_check_branch
      %1074 = sbr.rel (0) target = $region41
    $region40: #{tpu_custom_call.1} parent=1 // pred_region
      %1075 = dma.done [#allocation6], 128
    $region41: #{tpu_custom_call.1} parent=1 // pred_fallthru
      _
    %1076 = vsyncpa [#allocation4], 1
    %1077 = vsyncpa [#allocation6], 1

</llo_original>
